<compile_context>
chip_gen: v7x
topology: tpu7x:2x2x1
jax: 0.10.0
libtpu: 0.0.40
codegen_flags: <defaults>
</compile_context>

<pallas_src>
import math
from functools import partial

import jax
import jax.numpy as jnp
from jax.experimental import pallas as pl
from jax.experimental.pallas import tpu as pltpu


# ----------------------------- in-kernel helpers -----------------------------

def _gelu_erf(x):
    # Exact-erf GELU (PyTorch activation='gelu').  erf via Abramowitz&Stegun
    # 7.1.26 rational approximation; the 1/(1+p|x|) divide is moved to the EUP
    # with pl.reciprocal(approx=True) (VALU-bound FFN phase, EUP is idle).
    a1, a2, a3, a4, a5 = 0.254829592, -0.284496736, 1.421413741, -1.453152027, 1.061405429
    pc = 0.3275911
    xs = x * (1.0 / math.sqrt(2.0))
    ax = jnp.abs(xs)
    t = pl.reciprocal(1.0 + pc * ax, approx=True)
    poly = ((((a5 * t + a4) * t + a3) * t + a2) * t + a1) * t
    erf = 1.0 - poly * jnp.exp(-ax * ax)
    erf = jnp.where(xs >= 0, erf, -erf)
    return 0.5 * x * (1.0 + erf)


def _layer_norm_t(y, gamma, beta, eps):
    # LayerNorm over the feature axis, which is axis 0 in the transposed
    # (E, S) activation layout; gamma/beta are (E, 1).
    mu = jnp.mean(y, axis=0, keepdims=True)
    var = jnp.mean(jnp.square(y - mu), axis=0, keepdims=True)
    return (y - mu) * jax.lax.rsqrt(var + eps) * gamma + beta


# ------------------------------- Pallas kernel --------------------------------

def _encoder_stack_kernel(x_ref, wqkv_ref, bqkv_ref, wo_ref, w1_ref, b1_ref,
                          w2_ref, vecs_ref, o_ref, zs_ref,
                          *, n_heads: int, eps: float = 1e-5):
    # One encoder layer for one batch row, activations transposed: z = x^T (E,S).
    l = pl.program_id(1)
    E, S = zs_ref.shape
    H = n_heads
    Dh = E // H

    # First layer of this batch row: load the activation into the resident scratch.
    @pl.when(l == 0)
    def _():
        zs_ref[...] = x_ref[0].astype(jnp.float32)

    z = zs_ref[...]                                        # (E, S) f32
    wqkv = wqkv_ref[0]                                     # (3E, E), native (out, in)
    cd = wqkv.dtype                                        # MXU operand dtype (f32 or bf16)

    # ---- fused QKV projection: ONE full-width matmul (scale already folded) ----
    qkv = jnp.dot(wqkv, z.astype(cd),
                  preferred_element_type=jnp.float32) + bqkv_ref[0]   # (3E, S) f32
    qh = qkv[0:E].reshape(H, Dh, S)                        # leading/sublane split (Dh % 8 == 0)
    kh = qkv[E:2 * E].reshape(H, Dh, S)
    vh = qkv[2 * E:].reshape(H, Dh, S)
    q_sd = jnp.swapaxes(qh, 1, 2)                          # (H, S, Dh) minor-dim swap (XLU)

    # ---- attention, head-batched (leading batch dim), no per-head loop ----
    scores = jnp.einsum("hqd,hdk->hqk", q_sd.astype(cd), kh.astype(cd),
                        preferred_element_type=jnp.float32)           # (H, S, S)
    scores = scores - jnp.max(scores, axis=-1, keepdims=True)
    p = jnp.exp(scores)
    p = p * pl.reciprocal(jnp.sum(p, axis=-1, keepdims=True), approx=True)
    o = jnp.einsum("hqk,hdk->hqd", p.astype(cd), vh.astype(cd),
                   preferred_element_type=jnp.float32)                # (H, S, Dh)
    oT = jnp.swapaxes(o, 1, 2).reshape(E, S)               # concat over heads, transposed

    # ---- small per-layer vectors (packed (E, 6)) ----
    vecs = vecs_ref[0]
    bo, g1, be1 = vecs[:, 0:1], vecs[:, 1:2], vecs[:, 2:3]
    b2, g2, be2 = vecs[:, 3:4], vecs[:, 4:5], vecs[:, 5:6]

    # ---- output projection: single (E,E) @ (E,S) matmul ----
    attn = jnp.dot(wo_ref[0], oT.astype(cd),
                   preferred_element_type=jnp.float32) + bo           # (E, S)

    # residual + LayerNorm1 (post-norm, norm_first=False)
    x1 = _layer_norm_t(z + attn, g1, be1, eps)

    # ---- feed-forward: Linear -> GELU(erf) -> Linear ----
    h1 = jnp.dot(w1_ref[0], x1.astype(cd),
                 preferred_element_type=jnp.float32) + b1_ref[0]      # (F, S)
    h1 = _gelu_erf(h1)
    h2 = jnp.dot(w2_ref[0], h1.astype(cd),
                 preferred_element_type=jnp.float32) + b2             # (E, S)

    # residual + LayerNorm2; keep resident for the next layer.
    x2 = _layer_norm_t(x1 + h2, g2, be2, eps)
    zs_ref[...] = x2

    # Last layer: write the resident activation back out (transposed).
    @pl.when(l == pl.num_programs(1) - 1)
    def _():
        o_ref[0] = x2.astype(o_ref.dtype)


# --------------------------------- wrapper ------------------------------------

def transformer_encoder(x, layer_params, n_heads, use_bf16=False):
    """Full nn.TransformerEncoder stack as a single fused pallas_call."""
    B, S, E = x.shape
    L = len(layer_params)
    H = n_heads
    Dh = E // H
    F = layer_params[0]["w1"].shape[0]
    scale = 1.0 / math.sqrt(Dh)

    def stack(name):
        return jnp.stack([p[name] for p in layer_params], axis=0)

    # Weights stay in the native PyTorch (out, in) layout (kernel computes W @ x^T).
    wqkv = stack("wqkv")                                   # (L, 3E, E)
    bqkv = stack("bqkv")                                   # (L, 3E)
    wqkv = wqkv.at[:, :E, :].multiply(scale)               # fold 1/sqrt(Dh) into q
    bqkv = bqkv.at[:, :E].multiply(scale)
    bqkv = bqkv[..., None]                                 # (L, 3E, 1)
    wo = stack("wo")                                       # (L, E, E)
    w1 = stack("w1")                                       # (L, F, E)
    b1 = stack("b1")[..., None]                            # (L, F, 1)
    w2 = stack("w2")                                       # (L, E, F)
    # Pack the six E-sized per-layer vectors into one (L, E, 6) input.
    vecs = jnp.stack([jnp.stack([p["bo"], p["g1"], p["be1"],
                                 p["b2"], p["g2"], p["be2"]], axis=-1)
                      for p in layer_params], axis=0)

    if use_bf16:   # bf16 MXU operands on ALL generations; f32 accumulation.
        wqkv, wo, w1, w2 = (a.astype(jnp.bfloat16) for a in (wqkv, wo, w1, w2))

    # Transpose activations outside the kernel (plain XLA op): (B, E, S).
    x_t = jnp.swapaxes(x, 1, 2)

    def per_layer(arr):
        nd = arr.ndim
        return pl.BlockSpec((1,) + arr.shape[1:], lambda b, l: (l,) + (0,) * (nd - 1))

    out_t = pl.pallas_call(
        partial(_encoder_stack_kernel, n_heads=H),
        out_shape=jax.ShapeDtypeStruct((B, E, S), x.dtype),
        grid=(B, L),   # batch: parallel (megacore), layers: sequential / resident
        in_specs=[
            pl.BlockSpec((1, E, S), lambda b, l: (b, 0, 0)),     # x^T (read at l==0)
            per_layer(wqkv), per_layer(bqkv), per_layer(wo),
            per_layer(w1), per_layer(b1), per_layer(w2), per_layer(vecs),
        ],
        out_specs=pl.BlockSpec((1, E, S), lambda b, l: (b, 0, 0)),
        scratch_shapes=[pltpu.VMEM((E, S), jnp.float32)],
        compiler_params=pltpu.CompilerParams(
            dimension_semantics=("parallel", "arbitrary"),
            vmem_limit_bytes=32 * 1024 * 1024),
    )(x_t, wqkv, bqkv, wo, w1, b1, w2, vecs)

    return jnp.swapaxes(out_t, 1, 2)


# ----------------------- deterministic parameter setup ------------------------

def init_params(key, embed_dim, num_layers, mlp_ratio):
    # Parameters in native PyTorch layouts: Linear.weight is (out, in).
    E, F = embed_dim, embed_dim * mlp_ratio
    layers = []
    for _ in range(num_layers):
        key, k0, k1, k2, k3, k4, k5 = jax.random.split(key, 7)
        layers.append(dict(
            wqkv=0.02 * jax.random.normal(k0, (3 * E, E), jnp.float32),
            bqkv=0.02 * jax.random.normal(k1, (3 * E,), jnp.float32),
            wo=0.02 * jax.random.normal(k2, (E, E), jnp.float32),
            bo=jnp.zeros((E,), jnp.float32),
            g1=jnp.ones((E,), jnp.float32),
            be1=jnp.zeros((E,), jnp.float32),
            w1=0.02 * jax.random.normal(k3, (F, E), jnp.float32),
            b1=0.02 * jax.random.normal(k4, (F,), jnp.float32),
            w2=0.02 * jax.random.normal(k5, (E, F), jnp.float32),
            b2=jnp.zeros((E,), jnp.float32),
            g2=jnp.ones((E,), jnp.float32),
            be2=jnp.zeros((E,), jnp.float32),
        ))
    return layers


# ------------------------- pure-JAX reference (check) --------------------------

def _ref_layer(x, p, n_heads, eps=1e-5):
    B, S, E = x.shape
    Dh = E // n_heads
    hp = jax.lax.Precision.HIGHEST
    qkv = jnp.einsum("bse,fe->bsf", x, p["wqkv"], precision=hp) + p["bqkv"]
    q, k, v = qkv[..., :E], qkv[..., E:2 * E], qkv[..., 2 * E:]
    q = q.reshape(B, S, n_heads, Dh)
    k = k.reshape(B, S, n_heads, Dh)
    v = v.reshape(B, S, n_heads, Dh)
    s = jnp.einsum("bqhd,bkhd->bhqk", q, k, precision=hp) / math.sqrt(Dh)
    a = jax.nn.softmax(s, axis=-1)
    o = jnp.einsum("bhqk,bkhd->bqhd", a, v, precision=hp).reshape(B, S, E)
    attn = jnp.einsum("bse,fe->bsf", o, p["wo"], precision=hp) + p["bo"]

    def ln(y, g, b):
        mu = jnp.mean(y, -1, keepdims=True)
        var = jnp.mean((y - mu) ** 2, -1, keepdims=True)
        return (y - mu) / jnp.sqrt(var + eps) * g + b

    x1 = ln(x + attn, p["g1"], p["be1"])
    h = jnp.einsum("bse,fe->bsf", x1, p["w1"], precision=hp) + p["b1"]
    h = jax.nn.gelu(h, approximate=False)
    h = jnp.einsum("bsf,ef->bse", h, p["w2"], precision=hp) + p["b2"]
    return ln(x1 + h, p["g2"], p["be2"])


def ref_transformer_encoder(x, layer_params, n_heads):
    for p in layer_params:
        x = _ref_layer(x, p, n_heads)
    return x


# ------------------------------------ main -------------------------------------

if __name__ == "__main__":
    # Small shapes consistent with the module: embed_dim=32, n_heads=4,
    # num_layers=2, mlp_ratio=4, batch=2, seq=8.
    B, S, E, H, L, R = 2, 8, 32, 4, 2, 4

    key = jax.random.PRNGKey(0)
    kx, kp = jax.random.split(key)
    x = jax.random.normal(kx, (B, S, E), jnp.float32)
    params = init_params(kp, E, L, R)

    out = jax.block_until_ready(transformer_encoder(x, params, H))
    ref = ref_transformer_encoder(x, params, H)
    assert out.shape == (B, S, E), out.shape
    max_err = float(jnp.max(jnp.abs(out - ref)))
    assert max_err < 5e-3, f"f32 mismatch vs reference: {max_err}"

    # bf16 MXU-operand path (all TPU generations), f32 accumulation.
    out_bf16 = jax.block_until_ready(transformer_encoder(x, params, H, use_bf16=True))
    max_err_bf16 = float(jnp.max(jnp.abs(out_bf16 - ref)))
    assert max_err_bf16 < 7e-2, f"bf16 mismatch vs reference: {max_err_bf16}"

    print("KERNEL_OK")
</pallas_src>

<mosaic_0001>
module attributes {stable_mosaic.version = 11 : i64} {
  func.func @_encoder_stack_kernel(%arg0: i32, %arg1: i32, %arg2: memref<1x32x8xf32, #tpu.memory_space<vmem>>, %arg3: memref<1x96x32xf32, #tpu.memory_space<vmem>>, %arg4: memref<1x96x1xf32, #tpu.memory_space<vmem>>, %arg5: memref<1x32x32xf32, #tpu.memory_space<vmem>>, %arg6: memref<1x128x32xf32, #tpu.memory_space<vmem>>, %arg7: memref<1x128x1xf32, #tpu.memory_space<vmem>>, %arg8: memref<1x32x128xf32, #tpu.memory_space<vmem>>, %arg9: memref<1x32x6xf32, #tpu.memory_space<vmem>>, %arg10: memref<1x32x8xf32, #tpu.memory_space<vmem>>, %arg11: memref<32x8xf32, #tpu.memory_space<vmem>>) attributes {dimension_semantics = [#tpu.dimension_semantics<parallel>, #tpu.dimension_semantics<arbitrary>], iteration_bounds = array<i64: 2, 2>, scalar_prefetch = 0 : i64, scratch_operands = 1 : i64, tpu.core_type = #tpu.core_type<tc>, window_params = [{transform_indices = @transform_0, window_bounds = array<i64: 1, 32, 8>}, {transform_indices = @transform_1, window_bounds = array<i64: 1, 96, 32>}, {transform_indices = @transform_2, window_bounds = array<i64: 1, 96, 1>}, {transform_indices = @transform_3, window_bounds = array<i64: 1, 32, 32>}, {transform_indices = @transform_4, window_bounds = array<i64: 1, 128, 32>}, {transform_indices = @transform_5, window_bounds = array<i64: 1, 128, 1>}, {transform_indices = @transform_6, window_bounds = array<i64: 1, 32, 128>}, {transform_indices = @transform_7, window_bounds = array<i64: 1, 32, 6>}, {transform_indices = @transform_8, window_bounds = array<i64: 1, 32, 8>}]} {
    %c0_i32 = arith.constant 0 : i32
    %0 = arith.cmpi eq, %arg1, %c0_i32 : i32
    %1 = arith.extui %0 : i1 to i32
    %c0_i32_0 = arith.constant 0 : i32
    %2 = arith.cmpi ne, %1, %c0_i32_0 : i32
    scf.if %2 {
      %c0_57 = arith.constant 0 : index
      %c0_58 = arith.constant 0 : index
      %c0_59 = arith.constant 0 : index
      %146 = vector.load %arg2[%c0_57, %c0_58, %c0_59] : memref<1x32x8xf32, #tpu.memory_space<vmem>>, vector<1x32x8xf32>
      %147 = vector.shape_cast %146 : vector<1x32x8xf32> to vector<32x8xf32>
      %c0_60 = arith.constant 0 : index
      %c0_61 = arith.constant 0 : index
      %148 = vector.load %arg11[%c0_60, %c0_61] : memref<32x8xf32, #tpu.memory_space<vmem>>, vector<32x8xf32>
      tpu.vector_store %arg11[%c0_60, %c0_61], %147 {strides = array<i32>} : memref<32x8xf32, #tpu.memory_space<vmem>>, vector<32x8xf32>,
    } else {
    }
    %c0 = arith.constant 0 : index
    %c0_1 = arith.constant 0 : index
    %3 = vector.load %arg11[%c0, %c0_1] : memref<32x8xf32, #tpu.memory_space<vmem>>, vector<32x8xf32>
    %c0_2 = arith.constant 0 : index
    %c0_3 = arith.constant 0 : index
    %c0_4 = arith.constant 0 : index
    %4 = vector.load %arg3[%c0_2, %c0_3, %c0_4] : memref<1x96x32xf32, #tpu.memory_space<vmem>>, vector<1x96x32xf32>
    %5 = vector.shape_cast %4 : vector<1x96x32xf32> to vector<96x32xf32>
    %cst = arith.constant dense<0.000000e+00> : vector<96x8xf32>
    %6 = tpu.matmul %5, %3, %cst {dimension_numbers = #tpu.dot_dimension_numbers<[1], [0], [0], [1], [0, 0, 1, 1], [], []>} : vector<96x32xf32>, vector<32x8xf32>, vector<96x8xf32> -> vector<96x8xf32>
    %c0_5 = arith.constant 0 : index
    %c0_6 = arith.constant 0 : index
    %c0_7 = arith.constant 0 : index
    %7 = vector.load %arg4[%c0_5, %c0_6, %c0_7] : memref<1x96x1xf32, #tpu.memory_space<vmem>>, vector<1x96x1xf32>
    %8 = vector.shape_cast %7 : vector<1x96x1xf32> to vector<96x1xf32>
    %9 = vector.broadcast %8 : vector<96x1xf32> to vector<96x8xf32>
    %10 = arith.addf %6, %9 : vector<96x8xf32>
    %11 = vector.extract_strided_slice %10 {offsets = [0, 0], sizes = [32, 8], strides = [1, 1]} : vector<96x8xf32> to vector<32x8xf32>
    %12 = vector.shape_cast %11 : vector<32x8xf32> to vector<4x8x8xf32>
    %13 = vector.extract_strided_slice %10 {offsets = [32, 0], sizes = [32, 8], strides = [1, 1]} : vector<96x8xf32> to vector<32x8xf32>
    %14 = vector.shape_cast %13 : vector<32x8xf32> to vector<4x8x8xf32>
    %15 = vector.extract_strided_slice %10 {offsets = [64, 0], sizes = [32, 8], strides = [1, 1]} : vector<96x8xf32> to vector<32x8xf32>
    %16 = vector.shape_cast %15 : vector<32x8xf32> to vector<4x8x8xf32>
    %17 = tpu.transpose %12, [0, 2, 1] : vector<4x8x8xf32> -> vector<4x8x8xf32>
    "tpu.trace_start"() <{level = 10 : i32, message = "hqd,hdk->hqk"}> : () -> ()
    %cst_8 = arith.constant dense<0.000000e+00> : vector<4x8x8xf32>
    %18 = tpu.matmul %17, %14, %cst_8 {dimension_numbers = #tpu.dot_dimension_numbers<[2], [1], [1], [2], [0, 0, 0, 1, 1, 2], [0], [0]>} : vector<4x8x8xf32>, vector<4x8x8xf32>, vector<4x8x8xf32> -> vector<4x8x8xf32>
    "tpu.trace_stop"() : () -> ()
    %cst_9 = arith.constant dense<0xFF800000> : vector<4x8xf32>
    %19 = vector.multi_reduction <maximumf>, %18, %cst_9 [2] : vector<4x8x8xf32> to vector<4x8xf32>
    %20 = vector.shape_cast %19 : vector<4x8xf32> to vector<4x8x1xf32>
    %21 = vector.broadcast %20 : vector<4x8x1xf32> to vector<4x8x8xf32>
    %22 = arith.subf %18, %21 : vector<4x8x8xf32>
    %23 = math.exp %22 : vector<4x8x8xf32>
    %cst_10 = arith.constant dense<0.000000e+00> : vector<4x8xf32>
    %24 = vector.multi_reduction <add>, %23, %cst_10 [2] : vector<4x8x8xf32> to vector<4x8xf32>
    %25 = vector.shape_cast %24 : vector<4x8xf32> to vector<4x8x1xf32>
    %26 = tpu.reciprocal %25 {approx = true} : vector<4x8x1xf32> -> vector<4x8x1xf32>
    %27 = vector.broadcast %26 : vector<4x8x1xf32> to vector<4x8x8xf32>
    %28 = arith.mulf %23, %27 : vector<4x8x8xf32>
    "tpu.trace_start"() <{level = 10 : i32, message = "hqk,hdk->hqd"}> : () -> ()
    %cst_11 = arith.constant dense<0.000000e+00> : vector<4x8x8xf32>
    %29 = tpu.matmul %28, %16, %cst_11 {dimension_numbers = #tpu.dot_dimension_numbers<[2], [2], [1], [1], [0, 0, 0, 1, 1, 1], [0], [0]>} : vector<4x8x8xf32>, vector<4x8x8xf32>, vector<4x8x8xf32> -> vector<4x8x8xf32>
    "tpu.trace_stop"() : () -> ()
    %30 = tpu.transpose %29, [0, 2, 1] : vector<4x8x8xf32> -> vector<4x8x8xf32>
    %31 = vector.shape_cast %30 : vector<4x8x8xf32> to vector<32x8xf32>
    %c0_12 = arith.constant 0 : index
    %c0_13 = arith.constant 0 : index
    %c0_14 = arith.constant 0 : index
    %32 = vector.load %arg9[%c0_12, %c0_13, %c0_14] : memref<1x32x6xf32, #tpu.memory_space<vmem>>, vector<1x32x6xf32>
    %33 = vector.shape_cast %32 : vector<1x32x6xf32> to vector<32x6xf32>
    %34 = vector.extract_strided_slice %33 {offsets = [0, 0], sizes = [32, 1], strides = [1, 1]} : vector<32x6xf32> to vector<32x1xf32>
    %35 = vector.extract_strided_slice %33 {offsets = [0, 1], sizes = [32, 1], strides = [1, 1]} : vector<32x6xf32> to vector<32x1xf32>
    %36 = vector.extract_strided_slice %33 {offsets = [0, 2], sizes = [32, 1], strides = [1, 1]} : vector<32x6xf32> to vector<32x1xf32>
    %37 = vector.extract_strided_slice %33 {offsets = [0, 3], sizes = [32, 1], strides = [1, 1]} : vector<32x6xf32> to vector<32x1xf32>
    %38 = vector.extract_strided_slice %33 {offsets = [0, 4], sizes = [32, 1], strides = [1, 1]} : vector<32x6xf32> to vector<32x1xf32>
    %39 = vector.extract_strided_slice %33 {offsets = [0, 5], sizes = [32, 1], strides = [1, 1]} : vector<32x6xf32> to vector<32x1xf32>
    %c0_15 = arith.constant 0 : index
    %c0_16 = arith.constant 0 : index
    %c0_17 = arith.constant 0 : index
    %40 = vector.load %arg5[%c0_15, %c0_16, %c0_17] : memref<1x32x32xf32, #tpu.memory_space<vmem>>, vector<1x32x32xf32>
    %41 = vector.shape_cast %40 : vector<1x32x32xf32> to vector<32x32xf32>
    %cst_18 = arith.constant dense<0.000000e+00> : vector<32x8xf32>
    %42 = tpu.matmul %41, %31, %cst_18 {dimension_numbers = #tpu.dot_dimension_numbers<[1], [0], [0], [1], [0, 0, 1, 1], [], []>} : vector<32x32xf32>, vector<32x8xf32>, vector<32x8xf32> -> vector<32x8xf32>
    %43 = vector.broadcast %34 : vector<32x1xf32> to vector<32x8xf32>
    %44 = arith.addf %42, %43 : vector<32x8xf32>
    %45 = arith.addf %3, %44 : vector<32x8xf32>
    %cst_19 = arith.constant dense<0.000000e+00> : vector<8xf32>
    %46 = vector.multi_reduction <add>, %45, %cst_19 [0] : vector<32x8xf32> to vector<8xf32>
    %47 = vector.shape_cast %46 : vector<8xf32> to vector<1x8xf32>
    %cst_20 = arith.constant 3.200000e+01 : f32
    %48 = vector.broadcast %cst_20 : f32 to vector<1x8xf32>
    %49 = arith.divf %47, %48 : vector<1x8xf32>
    %50 = vector.broadcast %49 : vector<1x8xf32> to vector<32x8xf32>
    %51 = arith.subf %45, %50 : vector<32x8xf32>
    %52 = arith.mulf %51, %51 : vector<32x8xf32>
    %cst_21 = arith.constant dense<0.000000e+00> : vector<8xf32>
    %53 = vector.multi_reduction <add>, %52, %cst_21 [0] : vector<32x8xf32> to vector<8xf32>
    %54 = vector.shape_cast %53 : vector<8xf32> to vector<1x8xf32>
    %cst_22 = arith.constant 3.200000e+01 : f32
    %55 = vector.broadcast %cst_22 : f32 to vector<1x8xf32>
    %56 = arith.divf %54, %55 : vector<1x8xf32>
    %57 = vector.broadcast %49 : vector<1x8xf32> to vector<32x8xf32>
    %58 = arith.subf %45, %57 : vector<32x8xf32>
    %cst_23 = arith.constant 9.99999974E-6 : f32
    %59 = vector.broadcast %cst_23 : f32 to vector<1x8xf32>
    %60 = arith.addf %56, %59 : vector<1x8xf32>
    %61 = math.rsqrt %60 : vector<1x8xf32>
    %62 = vector.broadcast %61 : vector<1x8xf32> to vector<32x8xf32>
    %63 = arith.mulf %58, %62 : vector<32x8xf32>
    %64 = vector.broadcast %35 : vector<32x1xf32> to vector<32x8xf32>
    %65 = arith.mulf %63, %64 : vector<32x8xf32>
    %66 = vector.broadcast %36 : vector<32x1xf32> to vector<32x8xf32>
    %67 = arith.addf %65, %66 : vector<32x8xf32>
    %c0_24 = arith.constant 0 : index
    %c0_25 = arith.constant 0 : index
    %c0_26 = arith.constant 0 : index
    %68 = vector.load %arg6[%c0_24, %c0_25, %c0_26] : memref<1x128x32xf32, #tpu.memory_space<vmem>>, vector<1x128x32xf32>
    %69 = vector.shape_cast %68 : vector<1x128x32xf32> to vector<128x32xf32>
    %cst_27 = arith.constant dense<0.000000e+00> : vector<128x8xf32>
    %70 = tpu.matmul %69, %67, %cst_27 {dimension_numbers = #tpu.dot_dimension_numbers<[1], [0], [0], [1], [0, 0, 1, 1], [], []>} : vector<128x32xf32>, vector<32x8xf32>, vector<128x8xf32> -> vector<128x8xf32>
    %c0_28 = arith.constant 0 : index
    %c0_29 = arith.constant 0 : index
    %c0_30 = arith.constant 0 : index
    %71 = vector.load %arg7[%c0_28, %c0_29, %c0_30] : memref<1x128x1xf32, #tpu.memory_space<vmem>>, vector<1x128x1xf32>
    %72 = vector.shape_cast %71 : vector<1x128x1xf32> to vector<128x1xf32>
    %73 = vector.broadcast %72 : vector<128x1xf32> to vector<128x8xf32>
    %74 = arith.addf %70, %73 : vector<128x8xf32>
    %cst_31 = arith.constant 0.707106769 : f32
    %75 = vector.broadcast %cst_31 : f32 to vector<128x8xf32>
    %76 = arith.mulf %74, %75 : vector<128x8xf32>
    %77 = math.absf %76 : vector<128x8xf32>
    %cst_32 = arith.constant 0.327591091 : f32
    %78 = vector.broadcast %cst_32 : f32 to vector<128x8xf32>
    %79 = arith.mulf %78, %77 : vector<128x8xf32>
    %cst_33 = arith.constant 1.000000e+00 : f32
    %80 = vector.broadcast %cst_33 : f32 to vector<128x8xf32>
    %81 = arith.addf %80, %79 : vector<128x8xf32>
    %82 = tpu.reciprocal %81 {approx = true} : vector<128x8xf32> -> vector<128x8xf32>
    %cst_34 = arith.constant 1.06140542 : f32
    %83 = vector.broadcast %cst_34 : f32 to vector<128x8xf32>
    %84 = arith.mulf %83, %82 : vector<128x8xf32>
    %cst_35 = arith.constant -1.45315206 : f32
    %85 = vector.broadcast %cst_35 : f32 to vector<128x8xf32>
    %86 = arith.addf %84, %85 : vector<128x8xf32>
    %87 = arith.mulf %86, %82 : vector<128x8xf32>
    %cst_36 = arith.constant 1.42141378 : f32
    %88 = vector.broadcast %cst_36 : f32 to vector<128x8xf32>
    %89 = arith.addf %87, %88 : vector<128x8xf32>
    %90 = arith.mulf %89, %82 : vector<128x8xf32>
    %cst_37 = arith.constant -0.284496725 : f32
    %91 = vector.broadcast %cst_37 : f32 to vector<128x8xf32>
    %92 = arith.addf %90, %91 : vector<128x8xf32>
    %93 = arith.mulf %92, %82 : vector<128x8xf32>
    %cst_38 = arith.constant 0.254829586 : f32
    %94 = vector.broadcast %cst_38 : f32 to vector<128x8xf32>
    %95 = arith.addf %93, %94 : vector<128x8xf32>
    %96 = arith.mulf %95, %82 : vector<128x8xf32>
    %cst_39 = arith.constant 0.000000e+00 : f32
    %97 = vector.broadcast %cst_39 : f32 to vector<128x8xf32>
    %98 = arith.subf %97, %77 : vector<128x8xf32>
    %99 = arith.mulf %98, %77 : vector<128x8xf32>
    %100 = math.exp %99 : vector<128x8xf32>
    %101 = arith.mulf %96, %100 : vector<128x8xf32>
    %cst_40 = arith.constant 1.000000e+00 : f32
    %102 = vector.broadcast %cst_40 : f32 to vector<128x8xf32>
    %103 = arith.subf %102, %101 : vector<128x8xf32>
    %cst_41 = arith.constant 0.000000e+00 : f32
    %104 = vector.broadcast %cst_41 : f32 to vector<128x8xf32>
    %105 = arith.cmpf oge, %76, %104 : vector<128x8xf32>
    %cst_42 = arith.constant 0.000000e+00 : f32
    %106 = vector.broadcast %cst_42 : f32 to vector<128x8xf32>
    %107 = arith.subf %106, %103 : vector<128x8xf32>
    %108 = arith.select %105, %103, %107 : vector<128x8xi1>, vector<128x8xf32>
    %cst_43 = arith.constant 5.000000e-01 : f32
    %109 = vector.broadcast %cst_43 : f32 to vector<128x8xf32>
    %110 = arith.mulf %109, %74 : vector<128x8xf32>
    %cst_44 = arith.constant 1.000000e+00 : f32
    %111 = vector.broadcast %cst_44 : f32 to vector<128x8xf32>
    %112 = arith.addf %111, %108 : vector<128x8xf32>
    %113 = arith.mulf %110, %112 : vector<128x8xf32>
    %c0_45 = arith.constant 0 : index
    %c0_46 = arith.constant 0 : index
    %c0_47 = arith.constant 0 : index
    %114 = vector.load %arg8[%c0_45, %c0_46, %c0_47] : memref<1x32x128xf32, #tpu.memory_space<vmem>>, vector<1x32x128xf32>
    %115 = vector.shape_cast %114 : vector<1x32x128xf32> to vector<32x128xf32>
    %cst_48 = arith.constant dense<0.000000e+00> : vector<32x8xf32>
    %116 = tpu.matmul %115, %113, %cst_48 {dimension_numbers = #tpu.dot_dimension_numbers<[1], [0], [0], [1], [0, 0, 1, 1], [], []>} : vector<32x128xf32>, vector<128x8xf32>, vector<32x8xf32> -> vector<32x8xf32>
    %117 = vector.broadcast %37 : vector<32x1xf32> to vector<32x8xf32>
    %118 = arith.addf %116, %117 : vector<32x8xf32>
    %119 = arith.addf %67, %118 : vector<32x8xf32>
    %cst_49 = arith.constant dense<0.000000e+00> : vector<8xf32>
    %120 = vector.multi_reduction <add>, %119, %cst_49 [0] : vector<32x8xf32> to vector<8xf32>
    %121 = vector.shape_cast %120 : vector<8xf32> to vector<1x8xf32>
    %cst_50 = arith.constant 3.200000e+01 : f32
    %122 = vector.broadcast %cst_50 : f32 to vector<1x8xf32>
    %123 = arith.divf %121, %122 : vector<1x8xf32>
    %124 = vector.broadcast %123 : vector<1x8xf32> to vector<32x8xf32>
    %125 = arith.subf %119, %124 : vector<32x8xf32>
    %126 = arith.mulf %125, %125 : vector<32x8xf32>
    %cst_51 = arith.constant dense<0.000000e+00> : vector<8xf32>
    %127 = vector.multi_reduction <add>, %126, %cst_51 [0] : vector<32x8xf32> to vector<8xf32>
    %128 = vector.shape_cast %127 : vector<8xf32> to vector<1x8xf32>
    %cst_52 = arith.constant 3.200000e+01 : f32
    %129 = vector.broadcast %cst_52 : f32 to vector<1x8xf32>
    %130 = arith.divf %128, %129 : vector<1x8xf32>
    %131 = vector.broadcast %123 : vector<1x8xf32> to vector<32x8xf32>
    %132 = arith.subf %119, %131 : vector<32x8xf32>
    %cst_53 = arith.constant 9.99999974E-6 : f32
    %133 = vector.broadcast %cst_53 : f32 to vector<1x8xf32>
    %134 = arith.addf %130, %133 : vector<1x8xf32>
    %135 = math.rsqrt %134 : vector<1x8xf32>
    %136 = vector.broadcast %135 : vector<1x8xf32> to vector<32x8xf32>
    %137 = arith.mulf %132, %136 : vector<32x8xf32>
    %138 = vector.broadcast %38 : vector<32x1xf32> to vector<32x8xf32>
    %139 = arith.mulf %137, %138 : vector<32x8xf32>
    %140 = vector.broadcast %39 : vector<32x1xf32> to vector<32x8xf32>
    %141 = arith.addf %139, %140 : vector<32x8xf32>
    %c0_54 = arith.constant 0 : index
    %c0_55 = arith.constant 0 : index
    %142 = vector.load %arg11[%c0_54, %c0_55] : memref<32x8xf32, #tpu.memory_space<vmem>>, vector<32x8xf32>
    tpu.vector_store %arg11[%c0_54, %c0_55], %141 {strides = array<i32>} : memref<32x8xf32, #tpu.memory_space<vmem>>, vector<32x8xf32>,
    %c1_i32 = arith.constant 1 : i32
    %143 = arith.cmpi eq, %arg1, %c1_i32 : i32
    %144 = arith.extui %143 : i1 to i32
    %c0_i32_56 = arith.constant 0 : i32
    %145 = arith.cmpi ne, %144, %c0_i32_56 : i32
    scf.if %145 {
      %c0_57 = arith.constant 0 : index
      %c0_58 = arith.constant 0 : index
      %c0_59 = arith.constant 0 : index
      %146 = vector.load %arg10[%c0_57, %c0_58, %c0_59] : memref<1x32x8xf32, #tpu.memory_space<vmem>>, vector<1x32x8xf32>
      %147 = vector.shape_cast %146 : vector<1x32x8xf32> to vector<32x8xf32>
      %148 = vector.shape_cast %141 : vector<32x8xf32> to vector<1x32x8xf32>
      tpu.vector_store %arg10[%c0_57, %c0_58, %c0_59], %148 {strides = array<i32>} : memref<1x32x8xf32, #tpu.memory_space<vmem>>, vector<1x32x8xf32>,
    } else {
    }
    return
  }
  func.func @transform_0(%arg0: i32, %arg1: i32) -> (i32, i32, i32) {
    %c0_i32 = arith.constant 0 : i32
    %c0_i32_0 = arith.constant 0 : i32
    %c0_i32_1 = arith.constant 0 : i32
    return %arg0, %c0_i32, %c0_i32_0 : i32, i32, i32
  }
  func.func @transform_1(%arg0: i32, %arg1: i32) -> (i32, i32, i32) {
    %c0_i32 = arith.constant 0 : i32
    %c0_i32_0 = arith.constant 0 : i32
    %c0_i32_1 = arith.constant 0 : i32
    return %arg1, %c0_i32, %c0_i32_0 : i32, i32, i32
  }
  func.func @transform_2(%arg0: i32, %arg1: i32) -> (i32, i32, i32) {
    %c0_i32 = arith.constant 0 : i32
    %c0_i32_0 = arith.constant 0 : i32
    %c0_i32_1 = arith.constant 0 : i32
    return %arg1, %c0_i32, %c0_i32_0 : i32, i32, i32
  }
  func.func @transform_3(%arg0: i32, %arg1: i32) -> (i32, i32, i32) {
    %c0_i32 = arith.constant 0 : i32
    %c0_i32_0 = arith.constant 0 : i32
    %c0_i32_1 = arith.constant 0 : i32
    return %arg1, %c0_i32, %c0_i32_0 : i32, i32, i32
  }
  func.func @transform_4(%arg0: i32, %arg1: i32) -> (i32, i32, i32) {
    %c0_i32 = arith.constant 0 : i32
    %c0_i32_0 = arith.constant 0 : i32
    %c0_i32_1 = arith.constant 0 : i32
    return %arg1, %c0_i32, %c0_i32_0 : i32, i32, i32
  }
  func.func @transform_5(%arg0: i32, %arg1: i32) -> (i32, i32, i32) {
    %c0_i32 = arith.constant 0 : i32
    %c0_i32_0 = arith.constant 0 : i32
    %c0_i32_1 = arith.constant 0 : i32
    return %arg1, %c0_i32, %c0_i32_0 : i32, i32, i32
  }
  func.func @transform_6(%arg0: i32, %arg1: i32) -> (i32, i32, i32) {
    %c0_i32 = arith.constant 0 : i32
    %c0_i32_0 = arith.constant 0 : i32
    %c0_i32_1 = arith.constant 0 : i32
    return %arg1, %c0_i32, %c0_i32_0 : i32, i32, i32
  }
  func.func @transform_7(%arg0: i32, %arg1: i32) -> (i32, i32, i32) {
    %c0_i32 = arith.constant 0 : i32
    %c0_i32_0 = arith.constant 0 : i32
    %c0_i32_1 = arith.constant 0 : i32
    return %arg1, %c0_i32, %c0_i32_0 : i32, i32, i32
  }
  func.func @transform_8(%arg0: i32, %arg1: i32) -> (i32, i32, i32) {
    %c0_i32 = arith.constant 0 : i32
    %c0_i32_0 = arith.constant 0 : i32
    %c0_i32_1 = arith.constant 0 : i32
    return %arg0, %c0_i32, %c0_i32_0 : i32, i32, i32
  }
}

</mosaic_0001>

<llo_original>
// kernel: tpu_custom_call.1
$region0: #{tpu_custom_call.1}
  #allocation0 [shape = 'u32[]', space=smem, size = 0x4, offset = 0x4, fixed_abs, tag = 'smem constant byte address 0x4 - core index']
  #allocation1 [shape = 'u32[144,128]{1,0:T(1,128)}', space=vmem, size = 0x12000, scoped, tag = 'internal scratch']
  #allocation2 [shape = 'f32[32,8]{1,0:T(8,128)}', space=vmem, size = 0x4000, scoped, tag = 'scratch operand']
  %s0 = inlined_call_operand.vmem [shape: f32[2,32,8], index: 0, kind: input, shape index: {}]
  %s1 = inlined_call_operand.vmem [shape: f32[2,96,32], index: 1, kind: input, shape index: {}]
  %s2 = inlined_call_operand.vmem [shape: f32[2,96,1], index: 2, kind: input, shape index: {}]
  %s3 = inlined_call_operand.vmem [shape: f32[2,32,32], index: 3, kind: input, shape index: {}]
  %s4 = inlined_call_operand.vmem [shape: f32[2,128,32], index: 4, kind: input, shape index: {}]
  %s5 = inlined_call_operand.vmem [shape: f32[2,128,1], index: 5, kind: input, shape index: {}]
  %s6 = inlined_call_operand.vmem [shape: f32[2,32,128], index: 6, kind: input, shape index: {}]
  %s7 = inlined_call_operand.vmem [shape: f32[2,32,6], index: 7, kind: input, shape index: {}]
  %s8 = inlined_call_operand.vmem [shape: f32[2,32,8], index: 8, kind: output, shape index: {}]
  %s9 = sld [smem:[#allocation0]]
  $region73: #{tpu_custom_call.1} parent=0
    _
  %s11 = ssub.s32 1, %s9
  %s12 = scalar_select 0, %s11, %s9
  loop: start=0, step=1, limit=6
  $region2: #{tpu_custom_call.1} parent=0 // loop_pre_header
    _
  $region3: #{tpu_custom_call.1} parent=0 // loop_header
    %s14 = sphi 0, %s18
    %p15 = scmp.ge.s32.totalorder %s14, 6
    %s21 = sphi 0, %s33
    %s22 = sphi 0, %s29
    %s23 = sphi 0, %s21
    %s24 = sphi 0, %s22
    %s25 = sphi 0, %s23
    %s26 = sphi 0, %s24
    %s36 = sphi 0, %s38
    %s39 = sphi 0, %s36
    %s40 = sphi 0, %s39
    %s56 = sphi 0, %s40
    %s62 = sphi 0, %s64
    %s65 = sphi 0, %s62
    %s66 = sphi 0, %s65
    %s82 = sphi 0, %s66
    %s88 = sphi 0, %s90
    %s91 = sphi 0, %s88
    %s92 = sphi 0, %s91
    %s108 = sphi 0, %s92
    %s114 = sphi 0, %s116
    %s117 = sphi 0, %s114
    %s118 = sphi 0, %s117
    %s134 = sphi 0, %s118
    %s140 = sphi 0, %s142
    %s143 = sphi 0, %s140
    %s144 = sphi 0, %s143
    %s160 = sphi 0, %s144
    %s166 = sphi 0, %s168
    %s169 = sphi 0, %s166
    %s170 = sphi 0, %s169
    %s186 = sphi 0, %s170
    %s192 = sphi 0, %s194
    %s195 = sphi 0, %s192
    %s196 = sphi 0, %s195
    %s212 = sphi 0, %s196
    %s218 = sphi 0, %s220
    %s221 = sphi 0, %s218
    %s222 = sphi 0, %s221
    %s238 = sphi 0, %s222
    %s244 = sphi 0, %s246
    %s247 = sphi 0, %s244
    %s248 = sphi 0, %s247
    %s264 = sphi 0, %s248
  $region4: #{tpu_custom_call.1} parent=0 // loop_header_branch
    %17 = sbr.rel (%p15) target = $region8
  $region5: #{tpu_custom_call.1} parent=0 // loop_body
    %s19 = ssub.s32 %s14, 1
    %s20 = ssub.s32 %s14, 2
    %s27 = sadd.s32 1, %s22
    %p28 = scmp.ge.s32.totalorder %s27, 2
    %s29 = scalar_select %p28, 0, %s27
    %s30 = sadd.s32 1, %s21
    %s31 = scalar_select %p28, %s30, %s21
    %p32 = scmp.ge.s32.totalorder %s31, 2
    %s33 = scalar_select %p32, 0, %s31
    %s34 = ssub.s32 %s21, %s33
    %p35 = scmp.eq.s32.totalorder %s34, 0
    %s37 = sadd.s32 %s36, 1
    %s38 = scalar_select %p35, %s36, %s37
    %p41 = pneg %p35
    %p42 = scmp.eq.s32.totalorder %s14, 3
    %p43 = por %p41, %p42
    %p44 = scmp.ne.s32.totalorder %s36, %s39
    %p45 = scmp.eq.s32.totalorder %s14, 0
    %p46 = por %p44, %p45
    %p47 = scmp.ne.s32.totalorder %s36, %s39
    %p48 = scmp.eq.s32.totalorder %s19, 3
    %p49 = por %p47, %p48
    %p50 = scmp.ne.s32.totalorder %s39, %s40
    %p51 = scmp.eq.s32.totalorder %s19, 0
    %p52 = por %p50, %p51
    %p53 = scmp.ne.s32.totalorder %s39, %s40
    %p54 = scmp.eq.s32.totalorder %s20, 3
    %p55 = por %p53, %p54
    %p57 = scmp.ne.s32.totalorder %s40, %s56
    %p58 = scmp.eq.s32.totalorder %s20, 0
    %p59 = por %p57, %p58
    %s60 = ssub.s32 %s22, %s29
    %p61 = scmp.eq.s32.totalorder %s60, 0
    %s63 = sadd.s32 %s62, 1
    %s64 = scalar_select %p61, %s62, %s63
    %p67 = pneg %p61
    %p68 = scmp.eq.s32.totalorder %s14, 3
    %p69 = por %p67, %p68
    %p70 = scmp.ne.s32.totalorder %s62, %s65
    %p71 = scmp.eq.s32.totalorder %s14, 0
    %p72 = por %p70, %p71
    %p73 = scmp.ne.s32.totalorder %s62, %s65
    %p74 = scmp.eq.s32.totalorder %s19, 3
    %p75 = por %p73, %p74
    %p76 = scmp.ne.s32.totalorder %s65, %s66
    %p77 = scmp.eq.s32.totalorder %s19, 0
    %p78 = por %p76, %p77
    %p79 = scmp.ne.s32.totalorder %s65, %s66
    %p80 = scmp.eq.s32.totalorder %s20, 3
    %p81 = por %p79, %p80
    %p83 = scmp.ne.s32.totalorder %s66, %s82
    %p84 = scmp.eq.s32.totalorder %s20, 0
    %p85 = por %p83, %p84
    %s86 = ssub.s32 %s22, %s29
    %p87 = scmp.eq.s32.totalorder %s86, 0
    %s89 = sadd.s32 %s88, 1
    %s90 = scalar_select %p87, %s88, %s89
    %p93 = pneg %p87
    %p94 = scmp.eq.s32.totalorder %s14, 3
    %p95 = por %p93, %p94
    %p96 = scmp.ne.s32.totalorder %s88, %s91
    %p97 = scmp.eq.s32.totalorder %s14, 0
    %p98 = por %p96, %p97
    %p99 = scmp.ne.s32.totalorder %s88, %s91
    %p100 = scmp.eq.s32.totalorder %s19, 3
    %p101 = por %p99, %p100
    %p102 = scmp.ne.s32.totalorder %s91, %s92
    %p103 = scmp.eq.s32.totalorder %s19, 0
    %p104 = por %p102, %p103
    %p105 = scmp.ne.s32.totalorder %s91, %s92
    %p106 = scmp.eq.s32.totalorder %s20, 3
    %p107 = por %p105, %p106
    %p109 = scmp.ne.s32.totalorder %s92, %s108
    %p110 = scmp.eq.s32.totalorder %s20, 0
    %p111 = por %p109, %p110
    %s112 = ssub.s32 %s22, %s29
    %p113 = scmp.eq.s32.totalorder %s112, 0
    %s115 = sadd.s32 %s114, 1
    %s116 = scalar_select %p113, %s114, %s115
    %p119 = pneg %p113
    %p120 = scmp.eq.s32.totalorder %s14, 3
    %p121 = por %p119, %p120
    %p122 = scmp.ne.s32.totalorder %s114, %s117
    %p123 = scmp.eq.s32.totalorder %s14, 0
    %p124 = por %p122, %p123
    %p125 = scmp.ne.s32.totalorder %s114, %s117
    %p126 = scmp.eq.s32.totalorder %s19, 3
    %p127 = por %p125, %p126
    %p128 = scmp.ne.s32.totalorder %s117, %s118
    %p129 = scmp.eq.s32.totalorder %s19, 0
    %p130 = por %p128, %p129
    %p131 = scmp.ne.s32.totalorder %s117, %s118
    %p132 = scmp.eq.s32.totalorder %s20, 3
    %p133 = por %p131, %p132
    %p135 = scmp.ne.s32.totalorder %s118, %s134
    %p136 = scmp.eq.s32.totalorder %s20, 0
    %p137 = por %p135, %p136
    %s138 = ssub.s32 %s22, %s29
    %p139 = scmp.eq.s32.totalorder %s138, 0
    %s141 = sadd.s32 %s140, 1
    %s142 = scalar_select %p139, %s140, %s141
    %p145 = pneg %p139
    %p146 = scmp.eq.s32.totalorder %s14, 3
    %p147 = por %p145, %p146
    %p148 = scmp.ne.s32.totalorder %s140, %s143
    %p149 = scmp.eq.s32.totalorder %s14, 0
    %p150 = por %p148, %p149
    %p151 = scmp.ne.s32.totalorder %s140, %s143
    %p152 = scmp.eq.s32.totalorder %s19, 3
    %p153 = por %p151, %p152
    %p154 = scmp.ne.s32.totalorder %s143, %s144
    %p155 = scmp.eq.s32.totalorder %s19, 0
    %p156 = por %p154, %p155
    %p157 = scmp.ne.s32.totalorder %s143, %s144
    %p158 = scmp.eq.s32.totalorder %s20, 3
    %p159 = por %p157, %p158
    %p161 = scmp.ne.s32.totalorder %s144, %s160
    %p162 = scmp.eq.s32.totalorder %s20, 0
    %p163 = por %p161, %p162
    %s164 = ssub.s32 %s22, %s29
    %p165 = scmp.eq.s32.totalorder %s164, 0
    %s167 = sadd.s32 %s166, 1
    %s168 = scalar_select %p165, %s166, %s167
    %p171 = pneg %p165
    %p172 = scmp.eq.s32.totalorder %s14, 3
    %p173 = por %p171, %p172
    %p174 = scmp.ne.s32.totalorder %s166, %s169
    %p175 = scmp.eq.s32.totalorder %s14, 0
    %p176 = por %p174, %p175
    %p177 = scmp.ne.s32.totalorder %s166, %s169
    %p178 = scmp.eq.s32.totalorder %s19, 3
    %p179 = por %p177, %p178
    %p180 = scmp.ne.s32.totalorder %s169, %s170
    %p181 = scmp.eq.s32.totalorder %s19, 0
    %p182 = por %p180, %p181
    %p183 = scmp.ne.s32.totalorder %s169, %s170
    %p184 = scmp.eq.s32.totalorder %s20, 3
    %p185 = por %p183, %p184
    %p187 = scmp.ne.s32.totalorder %s170, %s186
    %p188 = scmp.eq.s32.totalorder %s20, 0
    %p189 = por %p187, %p188
    %s190 = ssub.s32 %s22, %s29
    %p191 = scmp.eq.s32.totalorder %s190, 0
    %s193 = sadd.s32 %s192, 1
    %s194 = scalar_select %p191, %s192, %s193
    %p197 = pneg %p191
    %p198 = scmp.eq.s32.totalorder %s14, 3
    %p199 = por %p197, %p198
    %p200 = scmp.ne.s32.totalorder %s192, %s195
    %p201 = scmp.eq.s32.totalorder %s14, 0
    %p202 = por %p200, %p201
    %p203 = scmp.ne.s32.totalorder %s192, %s195
    %p204 = scmp.eq.s32.totalorder %s19, 3
    %p205 = por %p203, %p204
    %p206 = scmp.ne.s32.totalorder %s195, %s196
    %p207 = scmp.eq.s32.totalorder %s19, 0
    %p208 = por %p206, %p207
    %p209 = scmp.ne.s32.totalorder %s195, %s196
    %p210 = scmp.eq.s32.totalorder %s20, 3
    %p211 = por %p209, %p210
    %p213 = scmp.ne.s32.totalorder %s196, %s212
    %p214 = scmp.eq.s32.totalorder %s20, 0
    %p215 = por %p213, %p214
    %s216 = ssub.s32 %s22, %s29
    %p217 = scmp.eq.s32.totalorder %s216, 0
    %s219 = sadd.s32 %s218, 1
    %s220 = scalar_select %p217, %s218, %s219
    %p223 = pneg %p217
    %p224 = scmp.eq.s32.totalorder %s14, 3
    %p225 = por %p223, %p224
    %p226 = scmp.ne.s32.totalorder %s218, %s221
    %p227 = scmp.eq.s32.totalorder %s14, 0
    %p228 = por %p226, %p227
    %p229 = scmp.ne.s32.totalorder %s218, %s221
    %p230 = scmp.eq.s32.totalorder %s19, 3
    %p231 = por %p229, %p230
    %p232 = scmp.ne.s32.totalorder %s221, %s222
    %p233 = scmp.eq.s32.totalorder %s19, 0
    %p234 = por %p232, %p233
    %p235 = scmp.ne.s32.totalorder %s221, %s222
    %p236 = scmp.eq.s32.totalorder %s20, 3
    %p237 = por %p235, %p236
    %p239 = scmp.ne.s32.totalorder %s222, %s238
    %p240 = scmp.eq.s32.totalorder %s20, 0
    %p241 = por %p239, %p240
    %s242 = ssub.s32 %s21, %s33
    %p243 = scmp.eq.s32.totalorder %s242, 0
    %s245 = sadd.s32 %s244, 1
    %s246 = scalar_select %p243, %s244, %s245
    %p249 = pneg %p243
    %p250 = scmp.eq.s32.totalorder %s14, 3
    %p251 = por %p249, %p250
    %p252 = scmp.ne.s32.totalorder %s244, %s247
    %p253 = scmp.eq.s32.totalorder %s14, 0
    %p254 = por %p252, %p253
    %p255 = scmp.ne.s32.totalorder %s244, %s247
    %p256 = scmp.eq.s32.totalorder %s19, 3
    %p257 = por %p255, %p256
    %p258 = scmp.ne.s32.totalorder %s247, %s248
    %p259 = scmp.eq.s32.totalorder %s19, 0
    %p260 = por %p258, %p259
    %p261 = scmp.ne.s32.totalorder %s247, %s248
    %p262 = scmp.eq.s32.totalorder %s20, 3
    %p263 = por %p261, %p262
    %p265 = scmp.ne.s32.totalorder %s248, %s264
    %p266 = scmp.eq.s32.totalorder %s20, 0
    %p267 = por %p265, %p266
    %p268 = scmp.le.s32.totalorder 1, %s14
    %p269 = scmp.lt.s32.totalorder %s14, 5
    %p270 = pnand %p268, %p269
    %p271 = pneg %p270
    // Predicated region
    $region9: #{tpu_custom_call.1} parent=5 // pred_check
      _
    $region10: #{tpu_custom_call.1} parent=5 // pred_check_branch
      %273 = sbr.rel (%p270) target = $region12
    $region11: #{tpu_custom_call.1} parent=5 // pred_region
      %s274 = ssub.s32 %s14, 1
    $region12: #{tpu_custom_call.1} parent=5 // pred_fallthru
      _
    %p275 = scmp.lt.s32.totalorder %s14, 4
    // Predicated region
    $region13: #{tpu_custom_call.1} parent=5 // pred_check
      %p276 = pneg %p275
    $region14: #{tpu_custom_call.1} parent=5 // pred_check_branch
      %278 = sbr.rel (%p276) target = $region16
    $region15: #{tpu_custom_call.1} parent=5 // pred_region
      // Predicated region
      $region17: #{tpu_custom_call.1} parent=15 // pred_check
        %p279 = pneg %p46
      $region18: #{tpu_custom_call.1} parent=15 // pred_check_branch
        %281 = sbr.rel (%p279) target = $region20
      $region19: #{tpu_custom_call.1} parent=15 // pred_region
        %p282 = scmp.lt.s32.totalorder %s21, 1
        %s283 = scalar_select %p282, %s21, 1
        %s284 = smul.addr %s283, 4
        %s285 = smul.addr %s284, 8
        %s286 = scalar_lea.vmem %s0, %s285
      $region20: #{tpu_custom_call.1} parent=15 // pred_fallthru
        _
      // Predicated region
      $region21: #{tpu_custom_call.1} parent=15 // pred_check
        %p287 = pneg %p72
      $region22: #{tpu_custom_call.1} parent=15 // pred_check_branch
        %289 = sbr.rel (%p287) target = $region24
      $region23: #{tpu_custom_call.1} parent=15 // pred_region
        %p290 = scmp.lt.s32.totalorder %s22, 1
        %s291 = scalar_select %p290, %s22, 1
        %s292 = smul.addr %s291, 12
        %s293 = smul.addr %s292, 8
        %s294 = scalar_lea.vmem %s1, %s293
      $region24: #{tpu_custom_call.1} parent=15 // pred_fallthru
        _
      // Predicated region
      $region25: #{tpu_custom_call.1} parent=15 // pred_check
        %p295 = pneg %p98
      $region26: #{tpu_custom_call.1} parent=15 // pred_check_branch
        %297 = sbr.rel (%p295) target = $region28
      $region27: #{tpu_custom_call.1} parent=15 // pred_region
        %p298 = scmp.lt.s32.totalorder %s22, 1
        %s299 = scalar_select %p298, %s22, 1
        %s300 = smul.addr %s299, 12
        %s301 = smul.addr %s300, 8
        %s302 = scalar_lea.vmem %s2, %s301
      $region28: #{tpu_custom_call.1} parent=15 // pred_fallthru
        _
      // Predicated region
      $region29: #{tpu_custom_call.1} parent=15 // pred_check
        %p303 = pneg %p124
      $region30: #{tpu_custom_call.1} parent=15 // pred_check_branch
        %305 = sbr.rel (%p303) target = $region32
      $region31: #{tpu_custom_call.1} parent=15 // pred_region
        %p306 = scmp.lt.s32.totalorder %s22, 1
        %s307 = scalar_select %p306, %s22, 1
        %s308 = smul.addr %s307, 4
        %s309 = smul.addr %s308, 8
        %s310 = scalar_lea.vmem %s3, %s309
      $region32: #{tpu_custom_call.1} parent=15 // pred_fallthru
        _
      // Predicated region
      $region33: #{tpu_custom_call.1} parent=15 // pred_check
        %p311 = pneg %p150
      $region34: #{tpu_custom_call.1} parent=15 // pred_check_branch
        %313 = sbr.rel (%p311) target = $region36
      $region35: #{tpu_custom_call.1} parent=15 // pred_region
        %p314 = scmp.lt.s32.totalorder %s22, 1
        %s315 = scalar_select %p314, %s22, 1
        %s316 = smul.addr %s315, 16
        %s317 = smul.addr %s316, 8
        %s318 = scalar_lea.vmem %s4, %s317
      $region36: #{tpu_custom_call.1} parent=15 // pred_fallthru
        _
      // Predicated region
      $region37: #{tpu_custom_call.1} parent=15 // pred_check
        %p319 = pneg %p176
      $region38: #{tpu_custom_call.1} parent=15 // pred_check_branch
        %321 = sbr.rel (%p319) target = $region40
      $region39: #{tpu_custom_call.1} parent=15 // pred_region
        %p322 = scmp.lt.s32.totalorder %s22, 1
        %s323 = scalar_select %p322, %s22, 1
        %s324 = smul.addr %s323, 16
        %s325 = smul.addr %s324, 8
        %s326 = scalar_lea.vmem %s5, %s325
      $region40: #{tpu_custom_call.1} parent=15 // pred_fallthru
        _
      // Predicated region
      $region41: #{tpu_custom_call.1} parent=15 // pred_check
        %p327 = pneg %p202
      $region42: #{tpu_custom_call.1} parent=15 // pred_check_branch
        %329 = sbr.rel (%p327) target = $region44
      $region43: #{tpu_custom_call.1} parent=15 // pred_region
        %p330 = scmp.lt.s32.totalorder %s22, 1
        %s331 = scalar_select %p330, %s22, 1
        %s332 = smul.addr %s331, 4
        %s333 = smul.addr %s332, 8
        %s334 = scalar_lea.vmem %s6, %s333
      $region44: #{tpu_custom_call.1} parent=15 // pred_fallthru
        _
      // Predicated region
      $region45: #{tpu_custom_call.1} parent=15 // pred_check
        %p335 = pneg %p228
      $region46: #{tpu_custom_call.1} parent=15 // pred_check_branch
        %337 = sbr.rel (%p335) target = $region48
      $region47: #{tpu_custom_call.1} parent=15 // pred_region
        %p338 = scmp.lt.s32.totalorder %s22, 1
        %s339 = scalar_select %p338, %s22, 1
        %s340 = smul.addr %s339, 4
        %s341 = smul.addr %s340, 8
        %s342 = scalar_lea.vmem %s7, %s341
      $region48: #{tpu_custom_call.1} parent=15 // pred_fallthru
        _
    $region16: #{tpu_custom_call.1} parent=5 // pred_fallthru
      _
    %p343 = scmp.le.s32.totalorder 1, %s14
    %p344 = scmp.lt.s32.totalorder %s14, 5
    %p345 = pnand %p343, %p344
    %p346 = pneg %p345
    // Predicated region
    $region49: #{tpu_custom_call.1} parent=5 // pred_check
      _
    $region50: #{tpu_custom_call.1} parent=5 // pred_check_branch
      %348 = sbr.rel (%p345) target = $region52
    $region51: #{tpu_custom_call.1} parent=5 // pred_region
      %s349 = ssub.s32 %s14, 1
      %p350 = scmp.lt.s32.totalorder %s23, 1
      %s351 = scalar_select %p350, %s23, 1
      %s352 = smul.addr %s351, 4
      %s353 = smul.addr %s352, 8
      %s354 = scalar_lea.vmem %s0, %s353
      %p355 = pneg %p52
      %p356 = pneg %p49
      %p357 = scmp.lt.s32.totalorder %s24, 1
      %s358 = scalar_select %p357, %s24, 1
      %s359 = smul.addr %s358, 12
      %s360 = smul.addr %s359, 8
      %s361 = scalar_lea.vmem %s1, %s360
      %p362 = pneg %p78
      %p363 = pneg %p75
      %p364 = scmp.lt.s32.totalorder %s24, 1
      %s365 = scalar_select %p364, %s24, 1
      %s366 = smul.addr %s365, 12
      %s367 = smul.addr %s366, 8
      %s368 = scalar_lea.vmem %s2, %s367
      %p369 = pneg %p104
      %p370 = pneg %p101
      %p371 = scmp.lt.s32.totalorder %s24, 1
      %s372 = scalar_select %p371, %s24, 1
      %s373 = smul.addr %s372, 4
      %s374 = smul.addr %s373, 8
      %s375 = scalar_lea.vmem %s3, %s374
      %p376 = pneg %p130
      %p377 = pneg %p127
      %p378 = scmp.lt.s32.totalorder %s24, 1
      %s379 = scalar_select %p378, %s24, 1
      %s380 = smul.addr %s379, 16
      %s381 = smul.addr %s380, 8
      %s382 = scalar_lea.vmem %s4, %s381
      %p383 = pneg %p156
      %p384 = pneg %p153
      %p385 = scmp.lt.s32.totalorder %s24, 1
      %s386 = scalar_select %p385, %s24, 1
      %s387 = smul.addr %s386, 16
      %s388 = smul.addr %s387, 8
      %s389 = scalar_lea.vmem %s5, %s388
      %p390 = pneg %p182
      %p391 = pneg %p179
      %p392 = scmp.lt.s32.totalorder %s24, 1
      %s393 = scalar_select %p392, %s24, 1
      %s394 = smul.addr %s393, 4
      %s395 = smul.addr %s394, 8
      %s396 = scalar_lea.vmem %s6, %s395
      %p397 = pneg %p208
      %p398 = pneg %p205
      %p399 = scmp.lt.s32.totalorder %s24, 1
      %s400 = scalar_select %p399, %s24, 1
      %s401 = smul.addr %s400, 4
      %s402 = smul.addr %s401, 8
      %s403 = scalar_lea.vmem %s7, %s402
      %p404 = pneg %p234
      %p405 = pneg %p231
      %p406 = pneg %p260
      %p407 = pneg %p257
      %p408 = scmp.lt.s32.totalorder %s23, 1
      %s409 = scalar_select %p408, %s23, 1
      %s410 = smul.addr %s409, 4
      %s411 = smul.addr %s410, 8
      %s412 = scalar_lea.vmem %s8, %s411
      %p413 = scmp.lt.s32.totalorder %s23, 1
      %s414 = scalar_select %p413, %s23, 1
      %s415 = smul.addr %s414, 4
      %s416 = smul.addr %s415, 8
      %s417 = scalar_lea.vmem %s0, %s416
      %p418 = scmp.lt.s32.totalorder %s24, 1
      %s419 = scalar_select %p418, %s24, 1
      %s420 = smul.addr %s419, 12
      %s421 = smul.addr %s420, 8
      %s422 = scalar_lea.vmem %s1, %s421
      %p423 = scmp.lt.s32.totalorder %s24, 1
      %s424 = scalar_select %p423, %s24, 1
      %s425 = smul.addr %s424, 12
      %s426 = smul.addr %s425, 8
      %s427 = scalar_lea.vmem %s2, %s426
      %p428 = scmp.lt.s32.totalorder %s24, 1
      %s429 = scalar_select %p428, %s24, 1
      %s430 = smul.addr %s429, 4
      %s431 = smul.addr %s430, 8
      %s432 = scalar_lea.vmem %s3, %s431
      %p433 = scmp.lt.s32.totalorder %s24, 1
      %s434 = scalar_select %p433, %s24, 1
      %s435 = smul.addr %s434, 16
      %s436 = smul.addr %s435, 8
      %s437 = scalar_lea.vmem %s4, %s436
      %p438 = scmp.lt.s32.totalorder %s24, 1
      %s439 = scalar_select %p438, %s24, 1
      %s440 = smul.addr %s439, 16
      %s441 = smul.addr %s440, 8
      %s442 = scalar_lea.vmem %s5, %s441
      %p443 = scmp.lt.s32.totalorder %s24, 1
      %s444 = scalar_select %p443, %s24, 1
      %s445 = smul.addr %s444, 4
      %s446 = smul.addr %s445, 8
      %s447 = scalar_lea.vmem %s6, %s446
      %p448 = scmp.lt.s32.totalorder %s24, 1
      %s449 = scalar_select %p448, %s24, 1
      %s450 = smul.addr %s449, 4
      %s451 = smul.addr %s450, 8
      %s452 = scalar_lea.vmem %s7, %s451
      %p453 = scmp.lt.s32.totalorder %s23, 1
      %s454 = scalar_select %p453, %s23, 1
      %s455 = smul.addr %s454, 4
      %s456 = smul.addr %s455, 8
      %s457 = scalar_lea.vmem %s8, %s456
      %p458 = scmp.eq.s32.totalorder %s24, 0
      // Predicated region
      $region53: #{tpu_custom_call.1} parent=51 // pred_check
        %p459 = pneg %p458
      $region54: #{tpu_custom_call.1} parent=51 // pred_check_branch
        %461 = sbr.rel (%p459) target = $region56
      $region55: #{tpu_custom_call.1} parent=51 // pred_region
        %v462 = vld [vmem:[%s417] sm:$0xff]
        %v463 = vld [vmem:[%s417 + $0x8] sm:$0xff]
        %v464 = vld [vmem:[%s417 + $0x10] sm:$0xff]
        %v465 = vld [vmem:[%s417 + $0x18] sm:$0xff]
        %vm466 = vcmask 64512
        %467 = vst.msk [vmem:[#allocation2] sm:$0xff] %vm466, %v462
        %468 = vst.msk [vmem:[#allocation2 + $0x8] sm:$0xff] %vm466, %v463
        %469 = vst.msk [vmem:[#allocation2 + $0x10] sm:$0xff] %vm466, %v464
        %470 = vst.msk [vmem:[#allocation2 + $0x18] sm:$0xff] %vm466, %v465
      $region56: #{tpu_custom_call.1} parent=51 // pred_fallthru
        _
      %v471 = vld [vmem:[#allocation2] sm:$0xff]
      %v472 = vld [vmem:[#allocation2 + $0x8] sm:$0xff]
      %v473 = vld [vmem:[#allocation2 + $0x10] sm:$0xff]
      %v474 = vld [vmem:[#allocation2 + $0x18] sm:$0xff]
      %v475 = vld [vmem:[%s422] sm:$0xff]
      %v476 = vld [vmem:[%s422 + $0x8] sm:$0xff]
      %v477 = vld [vmem:[%s422 + $0x10] sm:$0xff]
      %v478 = vld [vmem:[%s422 + $0x18] sm:$0xff]
      %v479 = vld [vmem:[%s422 + $0x20] sm:$0xff]
      %v480 = vld [vmem:[%s422 + $0x28] sm:$0xff]
      %v481 = vld [vmem:[%s422 + $0x30] sm:$0xff]
      %v482 = vld [vmem:[%s422 + $0x38] sm:$0xff]
      %v483 = vld [vmem:[%s422 + $0x40] sm:$0xff]
      %v484 = vld [vmem:[%s422 + $0x48] sm:$0xff]
      %v485 = vld [vmem:[%s422 + $0x50] sm:$0xff]
      %v486 = vld [vmem:[%s422 + $0x58] sm:$0xff]
      %v487 = vld [vmem:[%s427] sm:$0xff]
      %v488 = vld [vmem:[%s427 + $0x8] sm:$0xff]
      %v489 = vld [vmem:[%s427 + $0x10] sm:$0xff]
      %v490 = vld [vmem:[%s427 + $0x18] sm:$0xff]
      %v491 = vld [vmem:[%s427 + $0x20] sm:$0xff]
      %v492 = vld [vmem:[%s427 + $0x28] sm:$0xff]
      %v493 = vld [vmem:[%s427 + $0x30] sm:$0xff]
      %v494 = vld [vmem:[%s427 + $0x38] sm:$0xff]
      %v495 = vld [vmem:[%s427 + $0x40] sm:$0xff]
      %v496 = vld [vmem:[%s427 + $0x48] sm:$0xff]
      %v497 = vld [vmem:[%s427 + $0x50] sm:$0xff]
      %v498 = vld [vmem:[%s427 + $0x58] sm:$0xff]
      %500 = vset.pattern.permute.xlu0 0
      %501 = vperm.xlu0 %500, %v487
      %v502 = vpop.permute.xlu0 %501
      %505 = vset.pattern.permute.xlu0 0
      %506 = vperm.xlu0 %505, %v488
      %v507 = vpop.permute.xlu0 %506
      %510 = vset.pattern.permute.xlu0 0
      %511 = vperm.xlu0 %510, %v489
      %v512 = vpop.permute.xlu0 %511
      %515 = vset.pattern.permute.xlu0 0
      %516 = vperm.xlu0 %515, %v490
      %v517 = vpop.permute.xlu0 %516
      %520 = vset.pattern.permute.xlu0 0
      %521 = vperm.xlu0 %520, %v491
      %v522 = vpop.permute.xlu0 %521
      %525 = vset.pattern.permute.xlu0 0
      %526 = vperm.xlu0 %525, %v492
      %v527 = vpop.permute.xlu0 %526
      %530 = vset.pattern.permute.xlu0 0
      %531 = vperm.xlu0 %530, %v493
      %v532 = vpop.permute.xlu0 %531
      %535 = vset.pattern.permute.xlu0 0
      %536 = vperm.xlu0 %535, %v494
      %v537 = vpop.permute.xlu0 %536
      %540 = vset.pattern.permute.xlu0 0
      %541 = vperm.xlu0 %540, %v495
      %v542 = vpop.permute.xlu0 %541
      %545 = vset.pattern.permute.xlu0 0
      %546 = vperm.xlu0 %545, %v496
      %v547 = vpop.permute.xlu0 %546
      %550 = vset.pattern.permute.xlu0 0
      %551 = vperm.xlu0 %550, %v497
      %v552 = vpop.permute.xlu0 %551
      %555 = vset.pattern.permute.xlu0 0
      %556 = vperm.xlu0 %555, %v498
      %v557 = vpop.permute.xlu0 %556
      %vm559 = vcmask 261120
      %v561 = vsel %vm559, %v475, 0
      %v564 = vsel %vm559, %v476, 0
      %v567 = vsel %vm559, %v477, 0
      %v570 = vsel %vm559, %v478, 0
      %v573 = vsel %vm559, %v479, 0
      %v576 = vsel %vm559, %v480, 0
      %v579 = vsel %vm559, %v481, 0
      %v582 = vsel %vm559, %v482, 0
      %v585 = vsel %vm559, %v483, 0
      %v588 = vsel %vm559, %v484, 0
      %v591 = vsel %vm559, %v485, 0
      %v594 = vsel %vm559, %v486, 0
      %596 = vmatprep.subr.mxu0 0.0
      %597 = vmatpush1.msra.mxu0 %v471
      %598 = vmatprep.subr.mxu0 0.0
      %599 = vmatpush1.msra.mxu0 %v472
      %600 = vmatprep.subr.mxu0 0.0
      %601 = vmatpush1.msra.mxu0 %v473
      %602 = vmatprep.subr.mxu0 0.0
      %603 = vmatpush1.msra.mxu0 %v474
      %604 = vmatprep.subr.mxu0 0.0
      %605 = vmatpush1.msra.mxu0 0.0
      %606 = vmatprep.subr.mxu0 0.0
      %607 = vmatpush1.msra.mxu0 0.0
      %608 = vmatprep.subr.mxu0 0.0
      %609 = vmatpush1.msra.mxu0 0.0
      %610 = vmatprep.subr.mxu0 0.0
      %611 = vmatpush1.msra.mxu0 0.0
      %612 = vmatprep.subr.mxu0 0.0
      %613 = vmatpush1.msra.mxu0 0.0
      %614 = vmatprep.subr.mxu0 0.0
      %615 = vmatpush1.msra.mxu0 0.0
      %616 = vmatprep.subr.mxu0 0.0
      %617 = vmatpush1.msra.mxu0 0.0
      %618 = vmatprep.subr.mxu0 0.0
      %619 = vmatpush1.msra.mxu0 0.0
      %620 = vmatprep.subr.mxu0 0.0
      %621 = vmatpush1.msra.mxu0 0.0
      %622 = vmatprep.subr.mxu0 0.0
      %623 = vmatpush1.msra.mxu0 0.0
      %624 = vmatprep.subr.mxu0 0.0
      %625 = vmatpush1.msra.mxu0 0.0
      %626 = vmatprep.subr.mxu0 0.0
      %627 = vmatpush1.msra.mxu0 0.0
      %628 = vmatprep.subr.mxu0 0.0
      %629 = vmatpush1.msra.mxu0 0.0
      %630 = vmatprep.subr.mxu0 0.0
      %631 = vmatpush1.msra.mxu0 0.0
      %632 = vmatprep.subr.mxu0 0.0
      %633 = vmatpush1.msra.mxu0 0.0
      %634 = vmatprep.subr.mxu0 0.0
      %635 = vmatpush1.msra.mxu0 0.0
      %636 = vmatprep.subr.mxu0 0.0
      %637 = vmatpush1.msra.mxu0 0.0
      %638 = vmatprep.subr.mxu0 0.0
      %639 = vmatpush1.msra.mxu0 0.0
      %640 = vmatprep.subr.mxu0 0.0
      %641 = vmatpush1.msra.mxu0 0.0
      %642 = vmatprep.subr.mxu0 0.0
      %643 = vmatpush1.msra.mxu0 0.0
      %644 = vmatprep.subr.mxu0 0.0
      %645 = vmatpush1.msra.mxu0 0.0
      %646 = vmatprep.subr.mxu0 0.0
      %647 = vmatpush1.msra.mxu0 0.0
      %648 = vmatprep.subr.mxu0 0.0
      %649 = vmatpush1.msra.mxu0 0.0
      %650 = vmatprep.subr.mxu0 0.0
      %651 = vmatpush1.msra.mxu0 0.0
      %652 = vmatprep.subr.mxu0 0.0
      %653 = vmatpush1.msra.mxu0 0.0
      %654 = vmatprep.subr.mxu0 0.0
      %655 = vmatpush1.msra.mxu0 0.0
      %656 = vmatprep.subr.mxu0 0.0
      %657 = vmatpush1.msra.mxu0 0.0
      %658 = vmatprep.subr.mxu0 0.0
      %659 = vmatpush1.msra.mxu0 0.0
      %660 = vmatprep.mubr.f32.mxu0 0.0
      %661 = vmatmul.mubr.f32.gmra.mrb[0].mxu0 %v561
      %v662 = vpop.f32.mrb[0].mxu0
      %v663 = vadd.f32 %v502, %v662
      %v664 = vpop.f32.mrb[0].mxu0
      %665 = vmatprep.mubr.f32.mxu0 0.0
      %666 = vmatmul.mubr.f32.gmra.mrb[0].mxu0 %v564
      %v667 = vpop.f32.mrb[0].mxu0
      %v668 = vadd.f32 %v507, %v667
      %v669 = vpop.f32.mrb[0].mxu0
      %670 = vmatprep.mubr.f32.mxu0 0.0
      %671 = vmatmul.mubr.f32.gmra.mrb[0].mxu0 %v567
      %v672 = vpop.f32.mrb[0].mxu0
      %v673 = vadd.f32 %v512, %v672
      %v674 = vpop.f32.mrb[0].mxu0
      %675 = vmatprep.mubr.f32.mxu0 0.0
      %676 = vmatmul.mubr.f32.gmra.mrb[0].mxu0 %v570
      %v677 = vpop.f32.mrb[0].mxu0
      %v678 = vadd.f32 %v517, %v677
      %v679 = vpop.f32.mrb[0].mxu0
      %680 = vmatprep.mubr.f32.mxu0 0.0
      %681 = vmatmul.mubr.f32.gmra.mrb[0].mxu0 %v573
      %v682 = vpop.f32.mrb[0].mxu0
      %v683 = vadd.f32 %v522, %v682
      %v684 = vpop.f32.mrb[0].mxu0
      %685 = vmatprep.mubr.f32.mxu0 0.0
      %686 = vmatmul.mubr.f32.gmra.mrb[0].mxu0 %v576
      %v687 = vpop.f32.mrb[0].mxu0
      %v688 = vadd.f32 %v527, %v687
      %v689 = vpop.f32.mrb[0].mxu0
      %690 = vmatprep.mubr.f32.mxu0 0.0
      %691 = vmatmul.mubr.f32.gmra.mrb[0].mxu0 %v579
      %v692 = vpop.f32.mrb[0].mxu0
      %v693 = vadd.f32 %v532, %v692
      %v694 = vpop.f32.mrb[0].mxu0
      %695 = vmatprep.mubr.f32.mxu0 0.0
      %696 = vmatmul.mubr.f32.gmra.mrb[0].mxu0 %v582
      %v697 = vpop.f32.mrb[0].mxu0
      %v698 = vadd.f32 %v537, %v697
      %v699 = vpop.f32.mrb[0].mxu0
      %700 = vmatprep.mubr.f32.mxu0 0.0
      %701 = vmatmul.mubr.f32.gmra.mrb[0].mxu0 %v585
      %v702 = vpop.f32.mrb[0].mxu0
      %v703 = vadd.f32 %v542, %v702
      %v704 = vpop.f32.mrb[0].mxu0
      %705 = vmatprep.mubr.f32.mxu0 0.0
      %706 = vmatmul.mubr.f32.gmra.mrb[0].mxu0 %v588
      %v707 = vpop.f32.mrb[0].mxu0
      %v708 = vadd.f32 %v547, %v707
      %v709 = vpop.f32.mrb[0].mxu0
      %710 = vmatprep.mubr.f32.mxu0 0.0
      %711 = vmatmul.mubr.f32.gmra.mrb[0].mxu0 %v591
      %v712 = vpop.f32.mrb[0].mxu0
      %v713 = vadd.f32 %v552, %v712
      %v714 = vpop.f32.mrb[0].mxu0
      %715 = vmatprep.mubr.f32.mxu0 0.0
      %716 = vmatmul.mubr.f32.gmra.mrb[0].mxu0 %v594
      %v717 = vpop.f32.mrb[0].mxu0
      %v718 = vadd.f32 %v557, %v717
      %v719 = vpop.f32.mrb[0].mxu0
      %720 = vdwg.mxu0
      %721 = vxpose.xlu0.b32.start [1/16] %v663, 128
      %722 = vxpose.xlu0.b32.cont [2/16] 0.0, 128
      %723 = vxpose.xlu0.b32.cont [3/16] 0.0, 128
      %724 = vxpose.xlu0.b32.cont [4/16] 0.0, 128
      %725 = vxpose.xlu0.b32.cont [5/16] 0.0, 128
      %726 = vxpose.xlu0.b32.cont [6/16] 0.0, 128
      %727 = vxpose.xlu0.b32.cont [7/16] 0.0, 128
      %728 = vxpose.xlu0.b32.cont [8/16] 0.0, 128
      %729 = vxpose.xlu0.b32.cont [9/16] 0.0, 128
      %730 = vxpose.xlu0.b32.cont [10/16] 0.0, 128
      %731 = vxpose.xlu0.b32.cont [11/16] 0.0, 128
      %732 = vxpose.xlu0.b32.cont [12/16] 0.0, 128
      %733 = vxpose.xlu0.b32.cont [13/16] 0.0, 128
      %734 = vxpose.xlu0.b32.cont [14/16] 0.0, 128
      %735 = vxpose.xlu0.b32.cont [15/16] 0.0, 128
      %736 = vxpose.xlu0.b32.end [16/16] 0.0, 128
      %v737 = vpop.trf.xlu0
      %v738 = vpop.trf.xlu0
      %v739 = vpop.trf.xlu0
      %v740 = vpop.trf.xlu0
      %v741 = vpop.trf.xlu0
      %v742 = vpop.trf.xlu0
      %v743 = vpop.trf.xlu0
      %v744 = vpop.trf.xlu0
      %v745 = vpop.trf.xlu0
      %v746 = vpop.trf.xlu0
      %v747 = vpop.trf.xlu0
      %v748 = vpop.trf.xlu0
      %v749 = vpop.trf.xlu0
      %v750 = vpop.trf.xlu0
      %v751 = vpop.trf.xlu0
      %v752 = vpop.trf.xlu0
      %753 = vxpose.xlu0.b32.start [1/16] %v668, 128
      %754 = vxpose.xlu0.b32.cont [2/16] 0.0, 128
      %755 = vxpose.xlu0.b32.cont [3/16] 0.0, 128
      %756 = vxpose.xlu0.b32.cont [4/16] 0.0, 128
      %757 = vxpose.xlu0.b32.cont [5/16] 0.0, 128
      %758 = vxpose.xlu0.b32.cont [6/16] 0.0, 128
      %759 = vxpose.xlu0.b32.cont [7/16] 0.0, 128
      %760 = vxpose.xlu0.b32.cont [8/16] 0.0, 128
      %761 = vxpose.xlu0.b32.cont [9/16] 0.0, 128
      %762 = vxpose.xlu0.b32.cont [10/16] 0.0, 128
      %763 = vxpose.xlu0.b32.cont [11/16] 0.0, 128
      %764 = vxpose.xlu0.b32.cont [12/16] 0.0, 128
      %765 = vxpose.xlu0.b32.cont [13/16] 0.0, 128
      %766 = vxpose.xlu0.b32.cont [14/16] 0.0, 128
      %767 = vxpose.xlu0.b32.cont [15/16] 0.0, 128
      %768 = vxpose.xlu0.b32.end [16/16] 0.0, 128
      %v769 = vpop.trf.xlu0
      %v770 = vpop.trf.xlu0
      %v771 = vpop.trf.xlu0
      %v772 = vpop.trf.xlu0
      %v773 = vpop.trf.xlu0
      %v774 = vpop.trf.xlu0
      %v775 = vpop.trf.xlu0
      %v776 = vpop.trf.xlu0
      %v777 = vpop.trf.xlu0
      %v778 = vpop.trf.xlu0
      %v779 = vpop.trf.xlu0
      %v780 = vpop.trf.xlu0
      %v781 = vpop.trf.xlu0
      %v782 = vpop.trf.xlu0
      %v783 = vpop.trf.xlu0
      %v784 = vpop.trf.xlu0
      %785 = vxpose.xlu0.b32.start [1/16] %v673, 128
      %786 = vxpose.xlu0.b32.cont [2/16] 0.0, 128
      %787 = vxpose.xlu0.b32.cont [3/16] 0.0, 128
      %788 = vxpose.xlu0.b32.cont [4/16] 0.0, 128
      %789 = vxpose.xlu0.b32.cont [5/16] 0.0, 128
      %790 = vxpose.xlu0.b32.cont [6/16] 0.0, 128
      %791 = vxpose.xlu0.b32.cont [7/16] 0.0, 128
      %792 = vxpose.xlu0.b32.cont [8/16] 0.0, 128
      %793 = vxpose.xlu0.b32.cont [9/16] 0.0, 128
      %794 = vxpose.xlu0.b32.cont [10/16] 0.0, 128
      %795 = vxpose.xlu0.b32.cont [11/16] 0.0, 128
      %796 = vxpose.xlu0.b32.cont [12/16] 0.0, 128
      %797 = vxpose.xlu0.b32.cont [13/16] 0.0, 128
      %798 = vxpose.xlu0.b32.cont [14/16] 0.0, 128
      %799 = vxpose.xlu0.b32.cont [15/16] 0.0, 128
      %800 = vxpose.xlu0.b32.end [16/16] 0.0, 128
      %v801 = vpop.trf.xlu0
      %v802 = vpop.trf.xlu0
      %v803 = vpop.trf.xlu0
      %v804 = vpop.trf.xlu0
      %v805 = vpop.trf.xlu0
      %v806 = vpop.trf.xlu0
      %v807 = vpop.trf.xlu0
      %v808 = vpop.trf.xlu0
      %v809 = vpop.trf.xlu0
      %v810 = vpop.trf.xlu0
      %v811 = vpop.trf.xlu0
      %v812 = vpop.trf.xlu0
      %v813 = vpop.trf.xlu0
      %v814 = vpop.trf.xlu0
      %v815 = vpop.trf.xlu0
      %v816 = vpop.trf.xlu0
      %817 = vxpose.xlu0.b32.start [1/16] %v678, 128
      %818 = vxpose.xlu0.b32.cont [2/16] 0.0, 128
      %819 = vxpose.xlu0.b32.cont [3/16] 0.0, 128
      %820 = vxpose.xlu0.b32.cont [4/16] 0.0, 128
      %821 = vxpose.xlu0.b32.cont [5/16] 0.0, 128
      %822 = vxpose.xlu0.b32.cont [6/16] 0.0, 128
      %823 = vxpose.xlu0.b32.cont [7/16] 0.0, 128
      %824 = vxpose.xlu0.b32.cont [8/16] 0.0, 128
      %825 = vxpose.xlu0.b32.cont [9/16] 0.0, 128
      %826 = vxpose.xlu0.b32.cont [10/16] 0.0, 128
      %827 = vxpose.xlu0.b32.cont [11/16] 0.0, 128
      %828 = vxpose.xlu0.b32.cont [12/16] 0.0, 128
      %829 = vxpose.xlu0.b32.cont [13/16] 0.0, 128
      %830 = vxpose.xlu0.b32.cont [14/16] 0.0, 128
      %831 = vxpose.xlu0.b32.cont [15/16] 0.0, 128
      %832 = vxpose.xlu0.b32.end [16/16] 0.0, 128
      %v833 = vpop.trf.xlu0
      %v834 = vpop.trf.xlu0
      %v835 = vpop.trf.xlu0
      %v836 = vpop.trf.xlu0
      %v837 = vpop.trf.xlu0
      %v838 = vpop.trf.xlu0
      %v839 = vpop.trf.xlu0
      %v840 = vpop.trf.xlu0
      %v841 = vpop.trf.xlu0
      %v842 = vpop.trf.xlu0
      %v843 = vpop.trf.xlu0
      %v844 = vpop.trf.xlu0
      %v845 = vpop.trf.xlu0
      %v846 = vpop.trf.xlu0
      %v847 = vpop.trf.xlu0
      %v848 = vpop.trf.xlu0
      %vm849 = vcmask 64512
      %v851 = vsel %vm849, %v737, 0
      %853 = vmatprep.subr.mxu0 0.0
      %854 = vmatpush1.msra.mxu0 %v683
      %855 = vmatprep.subr.mxu0 0.0
      %856 = vmatpush1.msra.mxu0 0.0
      %857 = vmatprep.subr.mxu0 0.0
      %858 = vmatpush1.msra.mxu0 0.0
      %859 = vmatprep.subr.mxu0 0.0
      %860 = vmatpush1.msra.mxu0 0.0
      %861 = vmatprep.subr.mxu0 0.0
      %862 = vmatpush1.msra.mxu0 0.0
      %863 = vmatprep.subr.mxu0 0.0
      %864 = vmatpush1.msra.mxu0 0.0
      %865 = vmatprep.subr.mxu0 0.0
      %866 = vmatpush1.msra.mxu0 0.0
      %867 = vmatprep.subr.mxu0 0.0
      %868 = vmatpush1.msra.mxu0 0.0
      %869 = vmatprep.subr.mxu0 0.0
      %870 = vmatpush1.msra.mxu0 0.0
      %871 = vmatprep.subr.mxu0 0.0
      %872 = vmatpush1.msra.mxu0 0.0
      %873 = vmatprep.subr.mxu0 0.0
      %874 = vmatpush1.msra.mxu0 0.0
      %875 = vmatprep.subr.mxu0 0.0
      %876 = vmatpush1.msra.mxu0 0.0
      %877 = vmatprep.subr.mxu0 0.0
      %878 = vmatpush1.msra.mxu0 0.0
      %879 = vmatprep.subr.mxu0 0.0
      %880 = vmatpush1.msra.mxu0 0.0
      %881 = vmatprep.subr.mxu0 0.0
      %882 = vmatpush1.msra.mxu0 0.0
      %883 = vmatprep.subr.mxu0 0.0
      %884 = vmatpush1.msra.mxu0 0.0
      %885 = vmatprep.subr.mxu0 0.0
      %886 = vmatpush1.msra.mxu0 0.0
      %887 = vmatprep.subr.mxu0 0.0
      %888 = vmatpush1.msra.mxu0 0.0
      %889 = vmatprep.subr.mxu0 0.0
      %890 = vmatpush1.msra.mxu0 0.0
      %891 = vmatprep.subr.mxu0 0.0
      %892 = vmatpush1.msra.mxu0 0.0
      %893 = vmatprep.subr.mxu0 0.0
      %894 = vmatpush1.msra.mxu0 0.0
      %895 = vmatprep.subr.mxu0 0.0
      %896 = vmatpush1.msra.mxu0 0.0
      %897 = vmatprep.subr.mxu0 0.0
      %898 = vmatpush1.msra.mxu0 0.0
      %899 = vmatprep.subr.mxu0 0.0
      %900 = vmatpush1.msra.mxu0 0.0
      %901 = vmatprep.subr.mxu0 0.0
      %902 = vmatpush1.msra.mxu0 0.0
      %903 = vmatprep.subr.mxu0 0.0
      %904 = vmatpush1.msra.mxu0 0.0
      %905 = vmatprep.subr.mxu0 0.0
      %906 = vmatpush1.msra.mxu0 0.0
      %907 = vmatprep.subr.mxu0 0.0
      %908 = vmatpush1.msra.mxu0 0.0
      %909 = vmatprep.subr.mxu0 0.0
      %910 = vmatpush1.msra.mxu0 0.0
      %911 = vmatprep.subr.mxu0 0.0
      %912 = vmatpush1.msra.mxu0 0.0
      %913 = vmatprep.subr.mxu0 0.0
      %914 = vmatpush1.msra.mxu0 0.0
      %915 = vmatprep.subr.mxu0 0.0
      %916 = vmatpush1.msra.mxu0 0.0
      %917 = vmatprep.mubr.f32.mxu0 0.0
      %918 = vmatmul.mubr.f32.gmra.mrb[0].mxu0 %v851
      %v919 = vpop.f32.mrb[0].mxu0
      %v920 = vadd.f32 0.0, %v919
      %v921 = vpop.f32.mrb[0].mxu0
      %922 = vdwg.mxu0
      %v924 = vsel %vm849, %v769, 0
      %926 = vmatprep.subr.mxu0 0.0
      %927 = vmatpush1.msra.mxu0 %v688
      %928 = vmatprep.subr.mxu0 0.0
      %929 = vmatpush1.msra.mxu0 0.0
      %930 = vmatprep.subr.mxu0 0.0
      %931 = vmatpush1.msra.mxu0 0.0
      %932 = vmatprep.subr.mxu0 0.0
      %933 = vmatpush1.msra.mxu0 0.0
      %934 = vmatprep.subr.mxu0 0.0
      %935 = vmatpush1.msra.mxu0 0.0
      %936 = vmatprep.subr.mxu0 0.0
      %937 = vmatpush1.msra.mxu0 0.0
      %938 = vmatprep.subr.mxu0 0.0
      %939 = vmatpush1.msra.mxu0 0.0
      %940 = vmatprep.subr.mxu0 0.0
      %941 = vmatpush1.msra.mxu0 0.0
      %942 = vmatprep.subr.mxu0 0.0
      %943 = vmatpush1.msra.mxu0 0.0
      %944 = vmatprep.subr.mxu0 0.0
      %945 = vmatpush1.msra.mxu0 0.0
      %946 = vmatprep.subr.mxu0 0.0
      %947 = vmatpush1.msra.mxu0 0.0
      %948 = vmatprep.subr.mxu0 0.0
      %949 = vmatpush1.msra.mxu0 0.0
      %950 = vmatprep.subr.mxu0 0.0
      %951 = vmatpush1.msra.mxu0 0.0
      %952 = vmatprep.subr.mxu0 0.0
      %953 = vmatpush1.msra.mxu0 0.0
      %954 = vmatprep.subr.mxu0 0.0
      %955 = vmatpush1.msra.mxu0 0.0
      %956 = vmatprep.subr.mxu0 0.0
      %957 = vmatpush1.msra.mxu0 0.0
      %958 = vmatprep.subr.mxu0 0.0
      %959 = vmatpush1.msra.mxu0 0.0
      %960 = vmatprep.subr.mxu0 0.0
      %961 = vmatpush1.msra.mxu0 0.0
      %962 = vmatprep.subr.mxu0 0.0
      %963 = vmatpush1.msra.mxu0 0.0
      %964 = vmatprep.subr.mxu0 0.0
      %965 = vmatpush1.msra.mxu0 0.0
      %966 = vmatprep.subr.mxu0 0.0
      %967 = vmatpush1.msra.mxu0 0.0
      %968 = vmatprep.subr.mxu0 0.0
      %969 = vmatpush1.msra.mxu0 0.0
      %970 = vmatprep.subr.mxu0 0.0
      %971 = vmatpush1.msra.mxu0 0.0
      %972 = vmatprep.subr.mxu0 0.0
      %973 = vmatpush1.msra.mxu0 0.0
      %974 = vmatprep.subr.mxu0 0.0
      %975 = vmatpush1.msra.mxu0 0.0
      %976 = vmatprep.subr.mxu0 0.0
      %977 = vmatpush1.msra.mxu0 0.0
      %978 = vmatprep.subr.mxu0 0.0
      %979 = vmatpush1.msra.mxu0 0.0
      %980 = vmatprep.subr.mxu0 0.0
      %981 = vmatpush1.msra.mxu0 0.0
      %982 = vmatprep.subr.mxu0 0.0
      %983 = vmatpush1.msra.mxu0 0.0
      %984 = vmatprep.subr.mxu0 0.0
      %985 = vmatpush1.msra.mxu0 0.0
      %986 = vmatprep.subr.mxu0 0.0
      %987 = vmatpush1.msra.mxu0 0.0
      %988 = vmatprep.subr.mxu0 0.0
      %989 = vmatpush1.msra.mxu0 0.0
      %990 = vmatprep.mubr.f32.mxu0 0.0
      %991 = vmatmul.mubr.f32.gmra.mrb[0].mxu0 %v924
      %v992 = vpop.f32.mrb[0].mxu0
      %v993 = vadd.f32 0.0, %v992
      %v994 = vpop.f32.mrb[0].mxu0
      %995 = vdwg.mxu0
      %v997 = vsel %vm849, %v801, 0
      %999 = vmatprep.subr.mxu0 0.0
      %1000 = vmatpush1.msra.mxu0 %v693
      %1001 = vmatprep.subr.mxu0 0.0
      %1002 = vmatpush1.msra.mxu0 0.0
      %1003 = vmatprep.subr.mxu0 0.0
      %1004 = vmatpush1.msra.mxu0 0.0
      %1005 = vmatprep.subr.mxu0 0.0
      %1006 = vmatpush1.msra.mxu0 0.0
      %1007 = vmatprep.subr.mxu0 0.0
      %1008 = vmatpush1.msra.mxu0 0.0
      %1009 = vmatprep.subr.mxu0 0.0
      %1010 = vmatpush1.msra.mxu0 0.0
      %1011 = vmatprep.subr.mxu0 0.0
      %1012 = vmatpush1.msra.mxu0 0.0
      %1013 = vmatprep.subr.mxu0 0.0
      %1014 = vmatpush1.msra.mxu0 0.0
      %1015 = vmatprep.subr.mxu0 0.0
      %1016 = vmatpush1.msra.mxu0 0.0
      %1017 = vmatprep.subr.mxu0 0.0
      %1018 = vmatpush1.msra.mxu0 0.0
      %1019 = vmatprep.subr.mxu0 0.0
      %1020 = vmatpush1.msra.mxu0 0.0
      %1021 = vmatprep.subr.mxu0 0.0
      %1022 = vmatpush1.msra.mxu0 0.0
      %1023 = vmatprep.subr.mxu0 0.0
      %1024 = vmatpush1.msra.mxu0 0.0
      %1025 = vmatprep.subr.mxu0 0.0
      %1026 = vmatpush1.msra.mxu0 0.0
      %1027 = vmatprep.subr.mxu0 0.0
      %1028 = vmatpush1.msra.mxu0 0.0
      %1029 = vmatprep.subr.mxu0 0.0
      %1030 = vmatpush1.msra.mxu0 0.0
      %1031 = vmatprep.subr.mxu0 0.0
      %1032 = vmatpush1.msra.mxu0 0.0
      %1033 = vmatprep.subr.mxu0 0.0
      %1034 = vmatpush1.msra.mxu0 0.0
      %1035 = vmatprep.subr.mxu0 0.0
      %1036 = vmatpush1.msra.mxu0 0.0
      %1037 = vmatprep.subr.mxu0 0.0
      %1038 = vmatpush1.msra.mxu0 0.0
      %1039 = vmatprep.subr.mxu0 0.0
      %1040 = vmatpush1.msra.mxu0 0.0
      %1041 = vmatprep.subr.mxu0 0.0
      %1042 = vmatpush1.msra.mxu0 0.0
      %1043 = vmatprep.subr.mxu0 0.0
      %1044 = vmatpush1.msra.mxu0 0.0
      %1045 = vmatprep.subr.mxu0 0.0
      %1046 = vmatpush1.msra.mxu0 0.0
      %1047 = vmatprep.subr.mxu0 0.0
      %1048 = vmatpush1.msra.mxu0 0.0
      %1049 = vmatprep.subr.mxu0 0.0
      %1050 = vmatpush1.msra.mxu0 0.0
      %1051 = vmatprep.subr.mxu0 0.0
      %1052 = vmatpush1.msra.mxu0 0.0
      %1053 = vmatprep.subr.mxu0 0.0
      %1054 = vmatpush1.msra.mxu0 0.0
      %1055 = vmatprep.subr.mxu0 0.0
      %1056 = vmatpush1.msra.mxu0 0.0
      %1057 = vmatprep.subr.mxu0 0.0
      %1058 = vmatpush1.msra.mxu0 0.0
      %1059 = vmatprep.subr.mxu0 0.0
      %1060 = vmatpush1.msra.mxu0 0.0
      %1061 = vmatprep.subr.mxu0 0.0
      %1062 = vmatpush1.msra.mxu0 0.0
      %1063 = vmatprep.mubr.f32.mxu0 0.0
      %1064 = vmatmul.mubr.f32.gmra.mrb[0].mxu0 %v997
      %v1065 = vpop.f32.mrb[0].mxu0
      %v1066 = vadd.f32 0.0, %v1065
      %v1067 = vpop.f32.mrb[0].mxu0
      %1068 = vdwg.mxu0
      %v1070 = vsel %vm849, %v833, 0
      %1072 = vmatprep.subr.mxu0 0.0
      %1073 = vmatpush1.msra.mxu0 %v698
      %1074 = vmatprep.subr.mxu0 0.0
      %1075 = vmatpush1.msra.mxu0 0.0
      %1076 = vmatprep.subr.mxu0 0.0
      %1077 = vmatpush1.msra.mxu0 0.0
      %1078 = vmatprep.subr.mxu0 0.0
      %1079 = vmatpush1.msra.mxu0 0.0
      %1080 = vmatprep.subr.mxu0 0.0
      %1081 = vmatpush1.msra.mxu0 0.0
      %1082 = vmatprep.subr.mxu0 0.0
      %1083 = vmatpush1.msra.mxu0 0.0
      %1084 = vmatprep.subr.mxu0 0.0
      %1085 = vmatpush1.msra.mxu0 0.0
      %1086 = vmatprep.subr.mxu0 0.0
      %1087 = vmatpush1.msra.mxu0 0.0
      %1088 = vmatprep.subr.mxu0 0.0
      %1089 = vmatpush1.msra.mxu0 0.0
      %1090 = vmatprep.subr.mxu0 0.0
      %1091 = vmatpush1.msra.mxu0 0.0
      %1092 = vmatprep.subr.mxu0 0.0
      %1093 = vmatpush1.msra.mxu0 0.0
      %1094 = vmatprep.subr.mxu0 0.0
      %1095 = vmatpush1.msra.mxu0 0.0
      %1096 = vmatprep.subr.mxu0 0.0
      %1097 = vmatpush1.msra.mxu0 0.0
      %1098 = vmatprep.subr.mxu0 0.0
      %1099 = vmatpush1.msra.mxu0 0.0
      %1100 = vmatprep.subr.mxu0 0.0
      %1101 = vmatpush1.msra.mxu0 0.0
      %1102 = vmatprep.subr.mxu0 0.0
      %1103 = vmatpush1.msra.mxu0 0.0
      %1104 = vmatprep.subr.mxu0 0.0
      %1105 = vmatpush1.msra.mxu0 0.0
      %1106 = vmatprep.subr.mxu0 0.0
      %1107 = vmatpush1.msra.mxu0 0.0
      %1108 = vmatprep.subr.mxu0 0.0
      %1109 = vmatpush1.msra.mxu0 0.0
      %1110 = vmatprep.subr.mxu0 0.0
      %1111 = vmatpush1.msra.mxu0 0.0
      %1112 = vmatprep.subr.mxu0 0.0
      %1113 = vmatpush1.msra.mxu0 0.0
      %1114 = vmatprep.subr.mxu0 0.0
      %1115 = vmatpush1.msra.mxu0 0.0
      %1116 = vmatprep.subr.mxu0 0.0
      %1117 = vmatpush1.msra.mxu0 0.0
      %1118 = vmatprep.subr.mxu0 0.0
      %1119 = vmatpush1.msra.mxu0 0.0
      %1120 = vmatprep.subr.mxu0 0.0
      %1121 = vmatpush1.msra.mxu0 0.0
      %1122 = vmatprep.subr.mxu0 0.0
      %1123 = vmatpush1.msra.mxu0 0.0
      %1124 = vmatprep.subr.mxu0 0.0
      %1125 = vmatpush1.msra.mxu0 0.0
      %1126 = vmatprep.subr.mxu0 0.0
      %1127 = vmatpush1.msra.mxu0 0.0
      %1128 = vmatprep.subr.mxu0 0.0
      %1129 = vmatpush1.msra.mxu0 0.0
      %1130 = vmatprep.subr.mxu0 0.0
      %1131 = vmatpush1.msra.mxu0 0.0
      %1132 = vmatprep.subr.mxu0 0.0
      %1133 = vmatpush1.msra.mxu0 0.0
      %1134 = vmatprep.subr.mxu0 0.0
      %1135 = vmatpush1.msra.mxu0 0.0
      %1136 = vmatprep.mubr.f32.mxu0 0.0
      %1137 = vmatmul.mubr.f32.gmra.mrb[0].mxu0 %v1070
      %v1138 = vpop.f32.mrb[0].mxu0
      %v1139 = vadd.f32 0.0, %v1138
      %v1140 = vpop.f32.mrb[0].mxu0
      %1141 = vdwg.mxu0
      %v1142 = vsel %vm849, %v920, -inf
      %1143 = vmax.xlane.f32.xlu0 %v1142
      %v1144 = vpop.xlane.xlu0 %1143
      %v1145 = vsel %vm849, %v993, -inf
      %1146 = vmax.xlane.f32.xlu0 %v1145
      %v1147 = vpop.xlane.xlu0 %1146
      %v1148 = vsel %vm849, %v1066, -inf
      %1149 = vmax.xlane.f32.xlu0 %v1148
      %v1150 = vpop.xlane.xlu0 %1149
      %v1151 = vsel %vm849, %v1139, -inf
      %1152 = vmax.xlane.f32.xlu0 %v1151
      %v1153 = vpop.xlane.xlu0 %1152
      %v1154 = vsub.f32 %v920, %v1144
      %v1155 = vsub.f32 %v993, %v1147
      %v1156 = vsub.f32 %v1066, %v1150
      %v1157 = vsub.f32 %v1139, %v1153
      %v1158 = vmul.f32 %v1154, 1.442695
      %v1159 = vpow.pop %v1158
      %v1160 = vmul.f32 %v1155, 1.442695
      %v1161 = vpow.pop %v1160
      %v1162 = vmul.f32 %v1156, 1.442695
      %v1163 = vpow.pop %v1162
      %v1164 = vmul.f32 %v1157, 1.442695
      %v1165 = vpow.pop %v1164
      %v1166 = vsel %vm849, %v1159, 0.0
      %1167 = vadd.xlane.f32.xlu0 %v1166
      %v1168 = vpop.xlane.xlu0 %1167
      %v1169 = vsel %vm849, %v1161, 0.0
      %1170 = vadd.xlane.f32.xlu0 %v1169
      %v1171 = vpop.xlane.xlu0 %1170
      %v1172 = vsel %vm849, %v1163, 0.0
      %1173 = vadd.xlane.f32.xlu0 %v1172
      %v1174 = vpop.xlane.xlu0 %1173
      %v1175 = vsel %vm849, %v1165, 0.0
      %1176 = vadd.xlane.f32.xlu0 %v1175
      %v1177 = vpop.xlane.xlu0 %1176
      %v1178 = vrcp.pop %v1168
      %v1179 = vrcp.pop %v1171
      %v1180 = vrcp.pop %v1174
      %v1181 = vrcp.pop %v1177
      %v1182 = vmul.f32 %v1159, %v1178
      %v1183 = vmul.f32 %v1161, %v1179
      %v1184 = vmul.f32 %v1163, %v1180
      %v1185 = vmul.f32 %v1165, %v1181
      %v1187 = vsel %vm849, %v1182, 0
      %v1190 = vsel %vm849, %v703, 0
      %1192 = vmatprep.subr.mxu0 0.0
      %1193 = vmatpush1.xpose.msra.mxu0 %v1190
      %1194 = vmatprep.subr.mxu0 0.0
      %1195 = vmatpush1.xpose.msra.mxu0 0.0
      %1196 = vmatprep.subr.mxu0 0.0
      %1197 = vmatpush1.xpose.msra.mxu0 0.0
      %1198 = vmatprep.subr.mxu0 0.0
      %1199 = vmatpush1.xpose.msra.mxu0 0.0
      %1200 = vmatprep.subr.mxu0 0.0
      %1201 = vmatpush1.xpose.msra.mxu0 0.0
      %1202 = vmatprep.subr.mxu0 0.0
      %1203 = vmatpush1.xpose.msra.mxu0 0.0
      %1204 = vmatprep.subr.mxu0 0.0
      %1205 = vmatpush1.xpose.msra.mxu0 0.0
      %1206 = vmatprep.subr.mxu0 0.0
      %1207 = vmatpush1.xpose.msra.mxu0 0.0
      %1208 = vmatprep.subr.mxu0 0.0
      %1209 = vmatpush1.xpose.msra.mxu0 0.0
      %1210 = vmatprep.subr.mxu0 0.0
      %1211 = vmatpush1.xpose.msra.mxu0 0.0
      %1212 = vmatprep.subr.mxu0 0.0
      %1213 = vmatpush1.xpose.msra.mxu0 0.0
      %1214 = vmatprep.subr.mxu0 0.0
      %1215 = vmatpush1.xpose.msra.mxu0 0.0
      %1216 = vmatprep.subr.mxu0 0.0
      %1217 = vmatpush1.xpose.msra.mxu0 0.0
      %1218 = vmatprep.subr.mxu0 0.0
      %1219 = vmatpush1.xpose.msra.mxu0 0.0
      %1220 = vmatprep.subr.mxu0 0.0
      %1221 = vmatpush1.xpose.msra.mxu0 0.0
      %1222 = vmatprep.subr.mxu0 0.0
      %1223 = vmatpush1.xpose.msra.mxu0 0.0
      %1224 = vmatprep.subr.mxu0 0.0
      %1225 = vmatpush1.xpose.msra.mxu0 0.0
      %1226 = vmatprep.subr.mxu0 0.0
      %1227 = vmatpush1.xpose.msra.mxu0 0.0
      %1228 = vmatprep.subr.mxu0 0.0
      %1229 = vmatpush1.xpose.msra.mxu0 0.0
      %1230 = vmatprep.subr.mxu0 0.0
      %1231 = vmatpush1.xpose.msra.mxu0 0.0
      %1232 = vmatprep.subr.mxu0 0.0
      %1233 = vmatpush1.xpose.msra.mxu0 0.0
      %1234 = vmatprep.subr.mxu0 0.0
      %1235 = vmatpush1.xpose.msra.mxu0 0.0
      %1236 = vmatprep.subr.mxu0 0.0
      %1237 = vmatpush1.xpose.msra.mxu0 0.0
      %1238 = vmatprep.subr.mxu0 0.0
      %1239 = vmatpush1.xpose.msra.mxu0 0.0
      %1240 = vmatprep.subr.mxu0 0.0
      %1241 = vmatpush1.xpose.msra.mxu0 0.0
      %1242 = vmatprep.subr.mxu0 0.0
      %1243 = vmatpush1.xpose.msra.mxu0 0.0
      %1244 = vmatprep.subr.mxu0 0.0
      %1245 = vmatpush1.xpose.msra.mxu0 0.0
      %1246 = vmatprep.subr.mxu0 0.0
      %1247 = vmatpush1.xpose.msra.mxu0 0.0
      %1248 = vmatprep.subr.mxu0 0.0
      %1249 = vmatpush1.xpose.msra.mxu0 0.0
      %1250 = vmatprep.subr.mxu0 0.0
      %1251 = vmatpush1.xpose.msra.mxu0 0.0
      %1252 = vmatprep.subr.mxu0 0.0
      %1253 = vmatpush1.xpose.msra.mxu0 0.0
      %1254 = vmatprep.subr.mxu0 0.0
      %1255 = vmatpush1.xpose.msra.mxu0 0.0
      %1256 = vmatprep.mubr.f32.mxu0 0.0
      %1257 = vmatmul.mubr.f32.gmra.mrb[0].mxu0 %v1187
      %v1258 = vpop.f32.mrb[0].mxu0
      %v1259 = vadd.f32 0.0, %v1258
      %v1260 = vpop.f32.mrb[0].mxu0
      %1261 = vdwg.mxu0
      %v1263 = vsel %vm849, %v1183, 0
      %v1266 = vsel %vm849, %v708, 0
      %1268 = vmatprep.subr.mxu0 0.0
      %1269 = vmatpush1.xpose.msra.mxu0 %v1266
      %1270 = vmatprep.subr.mxu0 0.0
      %1271 = vmatpush1.xpose.msra.mxu0 0.0
      %1272 = vmatprep.subr.mxu0 0.0
      %1273 = vmatpush1.xpose.msra.mxu0 0.0
      %1274 = vmatprep.subr.mxu0 0.0
      %1275 = vmatpush1.xpose.msra.mxu0 0.0
      %1276 = vmatprep.subr.mxu0 0.0
      %1277 = vmatpush1.xpose.msra.mxu0 0.0
      %1278 = vmatprep.subr.mxu0 0.0
      %1279 = vmatpush1.xpose.msra.mxu0 0.0
      %1280 = vmatprep.subr.mxu0 0.0
      %1281 = vmatpush1.xpose.msra.mxu0 0.0
      %1282 = vmatprep.subr.mxu0 0.0
      %1283 = vmatpush1.xpose.msra.mxu0 0.0
      %1284 = vmatprep.subr.mxu0 0.0
      %1285 = vmatpush1.xpose.msra.mxu0 0.0
      %1286 = vmatprep.subr.mxu0 0.0
      %1287 = vmatpush1.xpose.msra.mxu0 0.0
      %1288 = vmatprep.subr.mxu0 0.0
      %1289 = vmatpush1.xpose.msra.mxu0 0.0
      %1290 = vmatprep.subr.mxu0 0.0
      %1291 = vmatpush1.xpose.msra.mxu0 0.0
      %1292 = vmatprep.subr.mxu0 0.0
      %1293 = vmatpush1.xpose.msra.mxu0 0.0
      %1294 = vmatprep.subr.mxu0 0.0
      %1295 = vmatpush1.xpose.msra.mxu0 0.0
      %1296 = vmatprep.subr.mxu0 0.0
      %1297 = vmatpush1.xpose.msra.mxu0 0.0
      %1298 = vmatprep.subr.mxu0 0.0
      %1299 = vmatpush1.xpose.msra.mxu0 0.0
      %1300 = vmatprep.subr.mxu0 0.0
      %1301 = vmatpush1.xpose.msra.mxu0 0.0
      %1302 = vmatprep.subr.mxu0 0.0
      %1303 = vmatpush1.xpose.msra.mxu0 0.0
      %1304 = vmatprep.subr.mxu0 0.0
      %1305 = vmatpush1.xpose.msra.mxu0 0.0
      %1306 = vmatprep.subr.mxu0 0.0
      %1307 = vmatpush1.xpose.msra.mxu0 0.0
      %1308 = vmatprep.subr.mxu0 0.0
      %1309 = vmatpush1.xpose.msra.mxu0 0.0
      %1310 = vmatprep.subr.mxu0 0.0
      %1311 = vmatpush1.xpose.msra.mxu0 0.0
      %1312 = vmatprep.subr.mxu0 0.0
      %1313 = vmatpush1.xpose.msra.mxu0 0.0
      %1314 = vmatprep.subr.mxu0 0.0
      %1315 = vmatpush1.xpose.msra.mxu0 0.0
      %1316 = vmatprep.subr.mxu0 0.0
      %1317 = vmatpush1.xpose.msra.mxu0 0.0
      %1318 = vmatprep.subr.mxu0 0.0
      %1319 = vmatpush1.xpose.msra.mxu0 0.0
      %1320 = vmatprep.subr.mxu0 0.0
      %1321 = vmatpush1.xpose.msra.mxu0 0.0
      %1322 = vmatprep.subr.mxu0 0.0
      %1323 = vmatpush1.xpose.msra.mxu0 0.0
      %1324 = vmatprep.subr.mxu0 0.0
      %1325 = vmatpush1.xpose.msra.mxu0 0.0
      %1326 = vmatprep.subr.mxu0 0.0
      %1327 = vmatpush1.xpose.msra.mxu0 0.0
      %1328 = vmatprep.subr.mxu0 0.0
      %1329 = vmatpush1.xpose.msra.mxu0 0.0
      %1330 = vmatprep.subr.mxu0 0.0
      %1331 = vmatpush1.xpose.msra.mxu0 0.0
      %1332 = vmatprep.mubr.f32.mxu0 0.0
      %1333 = vmatmul.mubr.f32.gmra.mrb[0].mxu0 %v1263
      %v1334 = vpop.f32.mrb[0].mxu0
      %v1335 = vadd.f32 0.0, %v1334
      %v1336 = vpop.f32.mrb[0].mxu0
      %1337 = vdwg.mxu0
      %v1339 = vsel %vm849, %v1184, 0
      %v1342 = vsel %vm849, %v713, 0
      %1344 = vmatprep.subr.mxu0 0.0
      %1345 = vmatpush1.xpose.msra.mxu0 %v1342
      %1346 = vmatprep.subr.mxu0 0.0
      %1347 = vmatpush1.xpose.msra.mxu0 0.0
      %1348 = vmatprep.subr.mxu0 0.0
      %1349 = vmatpush1.xpose.msra.mxu0 0.0
      %1350 = vmatprep.subr.mxu0 0.0
      %1351 = vmatpush1.xpose.msra.mxu0 0.0
      %1352 = vmatprep.subr.mxu0 0.0
      %1353 = vmatpush1.xpose.msra.mxu0 0.0
      %1354 = vmatprep.subr.mxu0 0.0
      %1355 = vmatpush1.xpose.msra.mxu0 0.0
      %1356 = vmatprep.subr.mxu0 0.0
      %1357 = vmatpush1.xpose.msra.mxu0 0.0
      %1358 = vmatprep.subr.mxu0 0.0
      %1359 = vmatpush1.xpose.msra.mxu0 0.0
      %1360 = vmatprep.subr.mxu0 0.0
      %1361 = vmatpush1.xpose.msra.mxu0 0.0
      %1362 = vmatprep.subr.mxu0 0.0
      %1363 = vmatpush1.xpose.msra.mxu0 0.0
      %1364 = vmatprep.subr.mxu0 0.0
      %1365 = vmatpush1.xpose.msra.mxu0 0.0
      %1366 = vmatprep.subr.mxu0 0.0
      %1367 = vmatpush1.xpose.msra.mxu0 0.0
      %1368 = vmatprep.subr.mxu0 0.0
      %1369 = vmatpush1.xpose.msra.mxu0 0.0
      %1370 = vmatprep.subr.mxu0 0.0
      %1371 = vmatpush1.xpose.msra.mxu0 0.0
      %1372 = vmatprep.subr.mxu0 0.0
      %1373 = vmatpush1.xpose.msra.mxu0 0.0
      %1374 = vmatprep.subr.mxu0 0.0
      %1375 = vmatpush1.xpose.msra.mxu0 0.0
      %1376 = vmatprep.subr.mxu0 0.0
      %1377 = vmatpush1.xpose.msra.mxu0 0.0
      %1378 = vmatprep.subr.mxu0 0.0
      %1379 = vmatpush1.xpose.msra.mxu0 0.0
      %1380 = vmatprep.subr.mxu0 0.0
      %1381 = vmatpush1.xpose.msra.mxu0 0.0
      %1382 = vmatprep.subr.mxu0 0.0
      %1383 = vmatpush1.xpose.msra.mxu0 0.0
      %1384 = vmatprep.subr.mxu0 0.0
      %1385 = vmatpush1.xpose.msra.mxu0 0.0
      %1386 = vmatprep.subr.mxu0 0.0
      %1387 = vmatpush1.xpose.msra.mxu0 0.0
      %1388 = vmatprep.subr.mxu0 0.0
      %1389 = vmatpush1.xpose.msra.mxu0 0.0
      %1390 = vmatprep.subr.mxu0 0.0
      %1391 = vmatpush1.xpose.msra.mxu0 0.0
      %1392 = vmatprep.subr.mxu0 0.0
      %1393 = vmatpush1.xpose.msra.mxu0 0.0
      %1394 = vmatprep.subr.mxu0 0.0
      %1395 = vmatpush1.xpose.msra.mxu0 0.0
      %1396 = vmatprep.subr.mxu0 0.0
      %1397 = vmatpush1.xpose.msra.mxu0 0.0
      %1398 = vmatprep.subr.mxu0 0.0
      %1399 = vmatpush1.xpose.msra.mxu0 0.0
      %1400 = vmatprep.subr.mxu0 0.0
      %1401 = vmatpush1.xpose.msra.mxu0 0.0
      %1402 = vmatprep.subr.mxu0 0.0
      %1403 = vmatpush1.xpose.msra.mxu0 0.0
      %1404 = vmatprep.subr.mxu0 0.0
      %1405 = vmatpush1.xpose.msra.mxu0 0.0
      %1406 = vmatprep.subr.mxu0 0.0
      %1407 = vmatpush1.xpose.msra.mxu0 0.0
      %1408 = vmatprep.mubr.f32.mxu0 0.0
      %1409 = vmatmul.mubr.f32.gmra.mrb[0].mxu0 %v1339
      %v1410 = vpop.f32.mrb[0].mxu0
      %v1411 = vadd.f32 0.0, %v1410
      %v1412 = vpop.f32.mrb[0].mxu0
      %1413 = vdwg.mxu0
      %v1415 = vsel %vm849, %v1185, 0
      %v1418 = vsel %vm849, %v718, 0
      %1420 = vmatprep.subr.mxu0 0.0
      %1421 = vmatpush1.xpose.msra.mxu0 %v1418
      %1422 = vmatprep.subr.mxu0 0.0
      %1423 = vmatpush1.xpose.msra.mxu0 0.0
      %1424 = vmatprep.subr.mxu0 0.0
      %1425 = vmatpush1.xpose.msra.mxu0 0.0
      %1426 = vmatprep.subr.mxu0 0.0
      %1427 = vmatpush1.xpose.msra.mxu0 0.0
      %1428 = vmatprep.subr.mxu0 0.0
      %1429 = vmatpush1.xpose.msra.mxu0 0.0
      %1430 = vmatprep.subr.mxu0 0.0
      %1431 = vmatpush1.xpose.msra.mxu0 0.0
      %1432 = vmatprep.subr.mxu0 0.0
      %1433 = vmatpush1.xpose.msra.mxu0 0.0
      %1434 = vmatprep.subr.mxu0 0.0
      %1435 = vmatpush1.xpose.msra.mxu0 0.0
      %1436 = vmatprep.subr.mxu0 0.0
      %1437 = vmatpush1.xpose.msra.mxu0 0.0
      %1438 = vmatprep.subr.mxu0 0.0
      %1439 = vmatpush1.xpose.msra.mxu0 0.0
      %1440 = vmatprep.subr.mxu0 0.0
      %1441 = vmatpush1.xpose.msra.mxu0 0.0
      %1442 = vmatprep.subr.mxu0 0.0
      %1443 = vmatpush1.xpose.msra.mxu0 0.0
      %1444 = vmatprep.subr.mxu0 0.0
      %1445 = vmatpush1.xpose.msra.mxu0 0.0
      %1446 = vmatprep.subr.mxu0 0.0
      %1447 = vmatpush1.xpose.msra.mxu0 0.0
      %1448 = vmatprep.subr.mxu0 0.0
      %1449 = vmatpush1.xpose.msra.mxu0 0.0
      %1450 = vmatprep.subr.mxu0 0.0
      %1451 = vmatpush1.xpose.msra.mxu0 0.0
      %1452 = vmatprep.subr.mxu0 0.0
      %1453 = vmatpush1.xpose.msra.mxu0 0.0
      %1454 = vmatprep.subr.mxu0 0.0
      %1455 = vmatpush1.xpose.msra.mxu0 0.0
      %1456 = vmatprep.subr.mxu0 0.0
      %1457 = vmatpush1.xpose.msra.mxu0 0.0
      %1458 = vmatprep.subr.mxu0 0.0
      %1459 = vmatpush1.xpose.msra.mxu0 0.0
      %1460 = vmatprep.subr.mxu0 0.0
      %1461 = vmatpush1.xpose.msra.mxu0 0.0
      %1462 = vmatprep.subr.mxu0 0.0
      %1463 = vmatpush1.xpose.msra.mxu0 0.0
      %1464 = vmatprep.subr.mxu0 0.0
      %1465 = vmatpush1.xpose.msra.mxu0 0.0
      %1466 = vmatprep.subr.mxu0 0.0
      %1467 = vmatpush1.xpose.msra.mxu0 0.0
      %1468 = vmatprep.subr.mxu0 0.0
      %1469 = vmatpush1.xpose.msra.mxu0 0.0
      %1470 = vmatprep.subr.mxu0 0.0
      %1471 = vmatpush1.xpose.msra.mxu0 0.0
      %1472 = vmatprep.subr.mxu0 0.0
      %1473 = vmatpush1.xpose.msra.mxu0 0.0
      %1474 = vmatprep.subr.mxu0 0.0
      %1475 = vmatpush1.xpose.msra.mxu0 0.0
      %1476 = vmatprep.subr.mxu0 0.0
      %1477 = vmatpush1.xpose.msra.mxu0 0.0
      %1478 = vmatprep.subr.mxu0 0.0
      %1479 = vmatpush1.xpose.msra.mxu0 0.0
      %1480 = vmatprep.subr.mxu0 0.0
      %1481 = vmatpush1.xpose.msra.mxu0 0.0
      %1482 = vmatprep.subr.mxu0 0.0
      %1483 = vmatpush1.xpose.msra.mxu0 0.0
      %1484 = vmatprep.mubr.f32.mxu0 0.0
      %1485 = vmatmul.mubr.f32.gmra.mrb[0].mxu0 %v1415
      %v1486 = vpop.f32.mrb[0].mxu0
      %v1487 = vadd.f32 0.0, %v1486
      %v1488 = vpop.f32.mrb[0].mxu0
      %1489 = vdwg.mxu0
      %1490 = vxpose.xlu0.b32.start [1/16] %v1259, 128
      %1491 = vxpose.xlu0.b32.cont [2/16] 0.0, 128
      %1492 = vxpose.xlu0.b32.cont [3/16] 0.0, 128
      %1493 = vxpose.xlu0.b32.cont [4/16] 0.0, 128
      %1494 = vxpose.xlu0.b32.cont [5/16] 0.0, 128
      %1495 = vxpose.xlu0.b32.cont [6/16] 0.0, 128
      %1496 = vxpose.xlu0.b32.cont [7/16] 0.0, 128
      %1497 = vxpose.xlu0.b32.cont [8/16] 0.0, 128
      %1498 = vxpose.xlu0.b32.cont [9/16] 0.0, 128
      %1499 = vxpose.xlu0.b32.cont [10/16] 0.0, 128
      %1500 = vxpose.xlu0.b32.cont [11/16] 0.0, 128
      %1501 = vxpose.xlu0.b32.cont [12/16] 0.0, 128
      %1502 = vxpose.xlu0.b32.cont [13/16] 0.0, 128
      %1503 = vxpose.xlu0.b32.cont [14/16] 0.0, 128
      %1504 = vxpose.xlu0.b32.cont [15/16] 0.0, 128
      %1505 = vxpose.xlu0.b32.end [16/16] 0.0, 128
      %v1506 = vpop.trf.xlu0
      %v1507 = vpop.trf.xlu0
      %v1508 = vpop.trf.xlu0
      %v1509 = vpop.trf.xlu0
      %v1510 = vpop.trf.xlu0
      %v1511 = vpop.trf.xlu0
      %v1512 = vpop.trf.xlu0
      %v1513 = vpop.trf.xlu0
      %v1514 = vpop.trf.xlu0
      %v1515 = vpop.trf.xlu0
      %v1516 = vpop.trf.xlu0
      %v1517 = vpop.trf.xlu0
      %v1518 = vpop.trf.xlu0
      %v1519 = vpop.trf.xlu0
      %v1520 = vpop.trf.xlu0
      %v1521 = vpop.trf.xlu0
      %1522 = vxpose.xlu0.b32.start [1/16] %v1335, 128
      %1523 = vxpose.xlu0.b32.cont [2/16] 0.0, 128
      %1524 = vxpose.xlu0.b32.cont [3/16] 0.0, 128
      %1525 = vxpose.xlu0.b32.cont [4/16] 0.0, 128
      %1526 = vxpose.xlu0.b32.cont [5/16] 0.0, 128
      %1527 = vxpose.xlu0.b32.cont [6/16] 0.0, 128
      %1528 = vxpose.xlu0.b32.cont [7/16] 0.0, 128
      %1529 = vxpose.xlu0.b32.cont [8/16] 0.0, 128
      %1530 = vxpose.xlu0.b32.cont [9/16] 0.0, 128
      %1531 = vxpose.xlu0.b32.cont [10/16] 0.0, 128
      %1532 = vxpose.xlu0.b32.cont [11/16] 0.0, 128
      %1533 = vxpose.xlu0.b32.cont [12/16] 0.0, 128
      %1534 = vxpose.xlu0.b32.cont [13/16] 0.0, 128
      %1535 = vxpose.xlu0.b32.cont [14/16] 0.0, 128
      %1536 = vxpose.xlu0.b32.cont [15/16] 0.0, 128
      %1537 = vxpose.xlu0.b32.end [16/16] 0.0, 128
      %v1538 = vpop.trf.xlu0
      %v1539 = vpop.trf.xlu0
      %v1540 = vpop.trf.xlu0
      %v1541 = vpop.trf.xlu0
      %v1542 = vpop.trf.xlu0
      %v1543 = vpop.trf.xlu0
      %v1544 = vpop.trf.xlu0
      %v1545 = vpop.trf.xlu0
      %v1546 = vpop.trf.xlu0
      %v1547 = vpop.trf.xlu0
      %v1548 = vpop.trf.xlu0
      %v1549 = vpop.trf.xlu0
      %v1550 = vpop.trf.xlu0
      %v1551 = vpop.trf.xlu0
      %v1552 = vpop.trf.xlu0
      %v1553 = vpop.trf.xlu0
      %1554 = vxpose.xlu0.b32.start [1/16] %v1411, 128
      %1555 = vxpose.xlu0.b32.cont [2/16] 0.0, 128
      %1556 = vxpose.xlu0.b32.cont [3/16] 0.0, 128
      %1557 = vxpose.xlu0.b32.cont [4/16] 0.0, 128
      %1558 = vxpose.xlu0.b32.cont [5/16] 0.0, 128
      %1559 = vxpose.xlu0.b32.cont [6/16] 0.0, 128
      %1560 = vxpose.xlu0.b32.cont [7/16] 0.0, 128
      %1561 = vxpose.xlu0.b32.cont [8/16] 0.0, 128
      %1562 = vxpose.xlu0.b32.cont [9/16] 0.0, 128
      %1563 = vxpose.xlu0.b32.cont [10/16] 0.0, 128
      %1564 = vxpose.xlu0.b32.cont [11/16] 0.0, 128
      %1565 = vxpose.xlu0.b32.cont [12/16] 0.0, 128
      %1566 = vxpose.xlu0.b32.cont [13/16] 0.0, 128
      %1567 = vxpose.xlu0.b32.cont [14/16] 0.0, 128
      %1568 = vxpose.xlu0.b32.cont [15/16] 0.0, 128
      %1569 = vxpose.xlu0.b32.end [16/16] 0.0, 128
      %v1570 = vpop.trf.xlu0
      %v1571 = vpop.trf.xlu0
      %v1572 = vpop.trf.xlu0
      %v1573 = vpop.trf.xlu0
      %v1574 = vpop.trf.xlu0
      %v1575 = vpop.trf.xlu0
      %v1576 = vpop.trf.xlu0
      %v1577 = vpop.trf.xlu0
      %v1578 = vpop.trf.xlu0
      %v1579 = vpop.trf.xlu0
      %v1580 = vpop.trf.xlu0
      %v1581 = vpop.trf.xlu0
      %v1582 = vpop.trf.xlu0
      %v1583 = vpop.trf.xlu0
      %v1584 = vpop.trf.xlu0
      %v1585 = vpop.trf.xlu0
      %1586 = vxpose.xlu0.b32.start [1/16] %v1487, 128
      %1587 = vxpose.xlu0.b32.cont [2/16] 0.0, 128
      %1588 = vxpose.xlu0.b32.cont [3/16] 0.0, 128
      %1589 = vxpose.xlu0.b32.cont [4/16] 0.0, 128
      %1590 = vxpose.xlu0.b32.cont [5/16] 0.0, 128
      %1591 = vxpose.xlu0.b32.cont [6/16] 0.0, 128
      %1592 = vxpose.xlu0.b32.cont [7/16] 0.0, 128
      %1593 = vxpose.xlu0.b32.cont [8/16] 0.0, 128
      %1594 = vxpose.xlu0.b32.cont [9/16] 0.0, 128
      %1595 = vxpose.xlu0.b32.cont [10/16] 0.0, 128
      %1596 = vxpose.xlu0.b32.cont [11/16] 0.0, 128
      %1597 = vxpose.xlu0.b32.cont [12/16] 0.0, 128
      %1598 = vxpose.xlu0.b32.cont [13/16] 0.0, 128
      %1599 = vxpose.xlu0.b32.cont [14/16] 0.0, 128
      %1600 = vxpose.xlu0.b32.cont [15/16] 0.0, 128
      %1601 = vxpose.xlu0.b32.end [16/16] 0.0, 128
      %v1602 = vpop.trf.xlu0
      %v1603 = vpop.trf.xlu0
      %v1604 = vpop.trf.xlu0
      %v1605 = vpop.trf.xlu0
      %v1606 = vpop.trf.xlu0
      %v1607 = vpop.trf.xlu0
      %v1608 = vpop.trf.xlu0
      %v1609 = vpop.trf.xlu0
      %v1610 = vpop.trf.xlu0
      %v1611 = vpop.trf.xlu0
      %v1612 = vpop.trf.xlu0
      %v1613 = vpop.trf.xlu0
      %v1614 = vpop.trf.xlu0
      %v1615 = vpop.trf.xlu0
      %v1616 = vpop.trf.xlu0
      %v1617 = vpop.trf.xlu0
      %v1618 = vld [vmem:[%s452] sm:$0xff]
      %v1619 = vld [vmem:[%s452 + $0x8] sm:$0xff]
      %v1620 = vld [vmem:[%s452 + $0x10] sm:$0xff]
      %v1621 = vld [vmem:[%s452 + $0x18] sm:$0xff]
      %v1622 = vld [vmem:[%s432] sm:$0xff]
      %v1623 = vld [vmem:[%s432 + $0x8] sm:$0xff]
      %v1624 = vld [vmem:[%s432 + $0x10] sm:$0xff]
      %v1625 = vld [vmem:[%s432 + $0x18] sm:$0xff]
      %1627 = vset.pattern.permute.xlu0 0
      %1628 = vperm.xlu0 %1627, %v1618
      %v1629 = vpop.permute.xlu0 %1628
      %1632 = vset.pattern.permute.xlu0 0
      %1633 = vperm.xlu0 %1632, %v1619
      %v1634 = vpop.permute.xlu0 %1633
      %1637 = vset.pattern.permute.xlu0 0
      %1638 = vperm.xlu0 %1637, %v1620
      %v1639 = vpop.permute.xlu0 %1638
      %1642 = vset.pattern.permute.xlu0 0
      %1643 = vperm.xlu0 %1642, %v1621
      %v1644 = vpop.permute.xlu0 %1643
      %v1647 = vsel %vm559, %v1622, 0
      %v1650 = vsel %vm559, %v1623, 0
      %v1653 = vsel %vm559, %v1624, 0
      %v1656 = vsel %vm559, %v1625, 0
      %1658 = vmatprep.subr.mxu0 0.0
      %1659 = vmatpush1.msra.mxu0 %v1506
      %1660 = vmatprep.subr.mxu0 0.0
      %1661 = vmatpush1.msra.mxu0 %v1538
      %1662 = vmatprep.subr.mxu0 0.0
      %1663 = vmatpush1.msra.mxu0 %v1570
      %1664 = vmatprep.subr.mxu0 0.0
      %1665 = vmatpush1.msra.mxu0 %v1602
      %1666 = vmatprep.subr.mxu0 0.0
      %1667 = vmatpush1.msra.mxu0 0.0
      %1668 = vmatprep.subr.mxu0 0.0
      %1669 = vmatpush1.msra.mxu0 0.0
      %1670 = vmatprep.subr.mxu0 0.0
      %1671 = vmatpush1.msra.mxu0 0.0
      %1672 = vmatprep.subr.mxu0 0.0
      %1673 = vmatpush1.msra.mxu0 0.0
      %1674 = vmatprep.subr.mxu0 0.0
      %1675 = vmatpush1.msra.mxu0 0.0
      %1676 = vmatprep.subr.mxu0 0.0
      %1677 = vmatpush1.msra.mxu0 0.0
      %1678 = vmatprep.subr.mxu0 0.0
      %1679 = vmatpush1.msra.mxu0 0.0
      %1680 = vmatprep.subr.mxu0 0.0
      %1681 = vmatpush1.msra.mxu0 0.0
      %1682 = vmatprep.subr.mxu0 0.0
      %1683 = vmatpush1.msra.mxu0 0.0
      %1684 = vmatprep.subr.mxu0 0.0
      %1685 = vmatpush1.msra.mxu0 0.0
      %1686 = vmatprep.subr.mxu0 0.0
      %1687 = vmatpush1.msra.mxu0 0.0
      %1688 = vmatprep.subr.mxu0 0.0
      %1689 = vmatpush1.msra.mxu0 0.0
      %1690 = vmatprep.subr.mxu0 0.0
      %1691 = vmatpush1.msra.mxu0 0.0
      %1692 = vmatprep.subr.mxu0 0.0
      %1693 = vmatpush1.msra.mxu0 0.0
      %1694 = vmatprep.subr.mxu0 0.0
      %1695 = vmatpush1.msra.mxu0 0.0
      %1696 = vmatprep.subr.mxu0 0.0
      %1697 = vmatpush1.msra.mxu0 0.0
      %1698 = vmatprep.subr.mxu0 0.0
      %1699 = vmatpush1.msra.mxu0 0.0
      %1700 = vmatprep.subr.mxu0 0.0
      %1701 = vmatpush1.msra.mxu0 0.0
      %1702 = vmatprep.subr.mxu0 0.0
      %1703 = vmatpush1.msra.mxu0 0.0
      %1704 = vmatprep.subr.mxu0 0.0
      %1705 = vmatpush1.msra.mxu0 0.0
      %1706 = vmatprep.subr.mxu0 0.0
      %1707 = vmatpush1.msra.mxu0 0.0
      %1708 = vmatprep.subr.mxu0 0.0
      %1709 = vmatpush1.msra.mxu0 0.0
      %1710 = vmatprep.subr.mxu0 0.0
      %1711 = vmatpush1.msra.mxu0 0.0
      %1712 = vmatprep.subr.mxu0 0.0
      %1713 = vmatpush1.msra.mxu0 0.0
      %1714 = vmatprep.subr.mxu0 0.0
      %1715 = vmatpush1.msra.mxu0 0.0
      %1716 = vmatprep.subr.mxu0 0.0
      %1717 = vmatpush1.msra.mxu0 0.0
      %1718 = vmatprep.subr.mxu0 0.0
      %1719 = vmatpush1.msra.mxu0 0.0
      %1720 = vmatprep.subr.mxu0 0.0
      %1721 = vmatpush1.msra.mxu0 0.0
      %1722 = vmatprep.mubr.f32.mxu0 0.0
      %1723 = vmatmul.mubr.f32.gmra.mrb[0].mxu0 %v1647
      %v1724 = vpop.f32.mrb[0].mxu0
      %v1725 = vadd.f32 %v1629, %v1724
      %v1726 = vpop.f32.mrb[0].mxu0
      %1727 = vmatprep.mubr.f32.mxu0 0.0
      %1728 = vmatmul.mubr.f32.gmra.mrb[0].mxu0 %v1650
      %v1729 = vpop.f32.mrb[0].mxu0
      %v1730 = vadd.f32 %v1634, %v1729
      %v1731 = vpop.f32.mrb[0].mxu0
      %1732 = vmatprep.mubr.f32.mxu0 0.0
      %1733 = vmatmul.mubr.f32.gmra.mrb[0].mxu0 %v1653
      %v1734 = vpop.f32.mrb[0].mxu0
      %v1735 = vadd.f32 %v1639, %v1734
      %v1736 = vpop.f32.mrb[0].mxu0
      %1737 = vmatprep.mubr.f32.mxu0 0.0
      %1738 = vmatmul.mubr.f32.gmra.mrb[0].mxu0 %v1656
      %v1739 = vpop.f32.mrb[0].mxu0
      %v1740 = vadd.f32 %v1644, %v1739
      %v1741 = vpop.f32.mrb[0].mxu0
      %1742 = vdwg.mxu0
      %v1743 = vadd.f32 %v471, %v1725
      %v1744 = vadd.f32 %v472, %v1730
      %v1745 = vadd.f32 %v473, %v1735
      %v1746 = vadd.f32 %v474, %v1740
      %v1747 = vsel %vm849, %v1743, 0.0
      %v1748 = vsel %vm849, %v1744, 0.0
      %v1749 = vadd.f32 %v1747, %v1748
      %v1750 = vsel %vm849, %v1745, 0.0
      %v1751 = vadd.f32 %v1749, %v1750
      %v1752 = vsel %vm849, %v1746, 0.0
      %v1753 = vadd.f32 %v1751, %v1752
      %v1754 = vrot.slane %v1753, 4
      %v1755 = vadd.f32 %v1753, %v1754
      %v1756 = vrot.slane %v1755, 2
      %v1757 = vadd.f32 %v1755, %v1756
      %v1758 = vrot.slane %v1757, 1
      %v1759 = vadd.f32 %v1757, %v1758
      %v1760 = vrcp.pop 32.0
      %v1761 = vmul.f32 %v1759, %v1760
      %v1762 = vsub.f32 %v1743, %v1761
      %v1763 = vsub.f32 %v1744, %v1761
      %v1764 = vsub.f32 %v1745, %v1761
      %v1765 = vsub.f32 %v1746, %v1761
      %v1766 = vmul.f32 %v1762, %v1762
      %v1767 = vmul.f32 %v1763, %v1763
      %v1768 = vmul.f32 %v1764, %v1764
      %v1769 = vmul.f32 %v1765, %v1765
      %v1770 = vsel %vm849, %v1766, 0.0
      %v1771 = vsel %vm849, %v1767, 0.0
      %v1772 = vadd.f32 %v1770, %v1771
      %v1773 = vsel %vm849, %v1768, 0.0
      %v1774 = vadd.f32 %v1772, %v1773
      %v1775 = vsel %vm849, %v1769, 0.0
      %v1776 = vadd.f32 %v1774, %v1775
      %v1777 = vrot.slane %v1776, 4
      %v1778 = vadd.f32 %v1776, %v1777
      %v1779 = vrot.slane %v1778, 2
      %v1780 = vadd.f32 %v1778, %v1779
      %v1781 = vrot.slane %v1780, 1
      %v1782 = vadd.f32 %v1780, %v1781
      %v1783 = vmul.f32 %v1782, %v1760
      %v1784 = vadd.f32 %v1783, 1e-05
      %v1785 = vrsqrt.pop %v1784
      %v1786 = vmul.f32 %v1762, %v1785
      %v1787 = vmul.f32 %v1763, %v1785
      %v1788 = vmul.f32 %v1764, %v1785
      %v1789 = vmul.f32 %v1765, %v1785
      %1790 = vset.pattern.permute.xlu0 1
      %1791 = vperm.xlu0 %1790, %v1618
      %v1792 = vpop.permute.xlu0 %1791
      %1794 = vset.pattern.permute.xlu0 1
      %1795 = vperm.xlu0 %1794, %v1619
      %v1796 = vpop.permute.xlu0 %1795
      %1798 = vset.pattern.permute.xlu0 1
      %1799 = vperm.xlu0 %1798, %v1620
      %v1800 = vpop.permute.xlu0 %1799
      %1802 = vset.pattern.permute.xlu0 1
      %1803 = vperm.xlu0 %1802, %v1621
      %v1804 = vpop.permute.xlu0 %1803
      %v1806 = vmul.f32 %v1786, %v1792
      %v1807 = vmul.f32 %v1787, %v1796
      %v1808 = vmul.f32 %v1788, %v1800
      %v1809 = vmul.f32 %v1789, %v1804
      %1810 = vset.pattern.permute.xlu0 2
      %1811 = vperm.xlu0 %1810, %v1618
      %v1812 = vpop.permute.xlu0 %1811
      %1814 = vset.pattern.permute.xlu0 2
      %1815 = vperm.xlu0 %1814, %v1619
      %v1816 = vpop.permute.xlu0 %1815
      %1818 = vset.pattern.permute.xlu0 2
      %1819 = vperm.xlu0 %1818, %v1620
      %v1820 = vpop.permute.xlu0 %1819
      %1822 = vset.pattern.permute.xlu0 2
      %1823 = vperm.xlu0 %1822, %v1621
      %v1824 = vpop.permute.xlu0 %1823
      %v1826 = vadd.f32 %v1806, %v1812
      %v1827 = vadd.f32 %v1807, %v1816
      %v1828 = vadd.f32 %v1808, %v1820
      %v1829 = vadd.f32 %v1809, %v1824
      %v1830 = vld [vmem:[%s437] sm:$0xff]
      %v1831 = vld [vmem:[%s437 + $0x8] sm:$0xff]
      %v1832 = vld [vmem:[%s437 + $0x10] sm:$0xff]
      %v1833 = vld [vmem:[%s437 + $0x18] sm:$0xff]
      %v1834 = vld [vmem:[%s437 + $0x20] sm:$0xff]
      %v1835 = vld [vmem:[%s437 + $0x28] sm:$0xff]
      %v1836 = vld [vmem:[%s437 + $0x30] sm:$0xff]
      %v1837 = vld [vmem:[%s437 + $0x38] sm:$0xff]
      %v1838 = vld [vmem:[%s437 + $0x40] sm:$0xff]
      %v1839 = vld [vmem:[%s437 + $0x48] sm:$0xff]
      %v1840 = vld [vmem:[%s437 + $0x50] sm:$0xff]
      %v1841 = vld [vmem:[%s437 + $0x58] sm:$0xff]
      %v1842 = vld [vmem:[%s437 + $0x60] sm:$0xff]
      %v1843 = vld [vmem:[%s437 + $0x68] sm:$0xff]
      %v1844 = vld [vmem:[%s437 + $0x70] sm:$0xff]
      %v1845 = vld [vmem:[%s437 + $0x78] sm:$0xff]
      %v1846 = vld [vmem:[%s442] sm:$0xff]
      %v1847 = vld [vmem:[%s442 + $0x8] sm:$0xff]
      %v1848 = vld [vmem:[%s442 + $0x10] sm:$0xff]
      %v1849 = vld [vmem:[%s442 + $0x18] sm:$0xff]
      %v1850 = vld [vmem:[%s442 + $0x20] sm:$0xff]
      %v1851 = vld [vmem:[%s442 + $0x28] sm:$0xff]
      %v1852 = vld [vmem:[%s442 + $0x30] sm:$0xff]
      %v1853 = vld [vmem:[%s442 + $0x38] sm:$0xff]
      %v1854 = vld [vmem:[%s442 + $0x40] sm:$0xff]
      %v1855 = vld [vmem:[%s442 + $0x48] sm:$0xff]
      %v1856 = vld [vmem:[%s442 + $0x50] sm:$0xff]
      %v1857 = vld [vmem:[%s442 + $0x58] sm:$0xff]
      %v1858 = vld [vmem:[%s442 + $0x60] sm:$0xff]
      %v1859 = vld [vmem:[%s442 + $0x68] sm:$0xff]
      %v1860 = vld [vmem:[%s442 + $0x70] sm:$0xff]
      %v1861 = vld [vmem:[%s442 + $0x78] sm:$0xff]
      %1863 = vset.pattern.permute.xlu0 0
      %1864 = vperm.xlu0 %1863, %v1846
      %v1865 = vpop.permute.xlu0 %1864
      %1868 = vset.pattern.permute.xlu0 0
      %1869 = vperm.xlu0 %1868, %v1847
      %v1870 = vpop.permute.xlu0 %1869
      %1873 = vset.pattern.permute.xlu0 0
      %1874 = vperm.xlu0 %1873, %v1848
      %v1875 = vpop.permute.xlu0 %1874
      %1878 = vset.pattern.permute.xlu0 0
      %1879 = vperm.xlu0 %1878, %v1849
      %v1880 = vpop.permute.xlu0 %1879
      %1883 = vset.pattern.permute.xlu0 0
      %1884 = vperm.xlu0 %1883, %v1850
      %v1885 = vpop.permute.xlu0 %1884
      %1888 = vset.pattern.permute.xlu0 0
      %1889 = vperm.xlu0 %1888, %v1851
      %v1890 = vpop.permute.xlu0 %1889
      %1893 = vset.pattern.permute.xlu0 0
      %1894 = vperm.xlu0 %1893, %v1852
      %v1895 = vpop.permute.xlu0 %1894
      %1898 = vset.pattern.permute.xlu0 0
      %1899 = vperm.xlu0 %1898, %v1853
      %v1900 = vpop.permute.xlu0 %1899
      %1903 = vset.pattern.permute.xlu0 0
      %1904 = vperm.xlu0 %1903, %v1854
      %v1905 = vpop.permute.xlu0 %1904
      %1908 = vset.pattern.permute.xlu0 0
      %1909 = vperm.xlu0 %1908, %v1855
      %v1910 = vpop.permute.xlu0 %1909
      %1913 = vset.pattern.permute.xlu0 0
      %1914 = vperm.xlu0 %1913, %v1856
      %v1915 = vpop.permute.xlu0 %1914
      %1918 = vset.pattern.permute.xlu0 0
      %1919 = vperm.xlu0 %1918, %v1857
      %v1920 = vpop.permute.xlu0 %1919
      %1923 = vset.pattern.permute.xlu0 0
      %1924 = vperm.xlu0 %1923, %v1858
      %v1925 = vpop.permute.xlu0 %1924
      %1928 = vset.pattern.permute.xlu0 0
      %1929 = vperm.xlu0 %1928, %v1859
      %v1930 = vpop.permute.xlu0 %1929
      %1933 = vset.pattern.permute.xlu0 0
      %1934 = vperm.xlu0 %1933, %v1860
      %v1935 = vpop.permute.xlu0 %1934
      %1938 = vset.pattern.permute.xlu0 0
      %1939 = vperm.xlu0 %1938, %v1861
      %v1940 = vpop.permute.xlu0 %1939
      %v1943 = vsel %vm559, %v1830, 0
      %v1946 = vsel %vm559, %v1831, 0
      %v1949 = vsel %vm559, %v1832, 0
      %v1952 = vsel %vm559, %v1833, 0
      %v1955 = vsel %vm559, %v1834, 0
      %v1958 = vsel %vm559, %v1835, 0
      %v1961 = vsel %vm559, %v1836, 0
      %v1964 = vsel %vm559, %v1837, 0
      %v1967 = vsel %vm559, %v1838, 0
      %v1970 = vsel %vm559, %v1839, 0
      %v1973 = vsel %vm559, %v1840, 0
      %v1976 = vsel %vm559, %v1841, 0
      %v1979 = vsel %vm559, %v1842, 0
      %v1982 = vsel %vm559, %v1843, 0
      %v1985 = vsel %vm559, %v1844, 0
      %v1988 = vsel %vm559, %v1845, 0
      %1990 = vmatprep.subr.mxu0 0.0
      %1991 = vmatpush1.msra.mxu0 %v1826
      %1992 = vmatprep.subr.mxu0 0.0
      %1993 = vmatpush1.msra.mxu0 %v1827
      %1994 = vmatprep.subr.mxu0 0.0
      %1995 = vmatpush1.msra.mxu0 %v1828
      %1996 = vmatprep.subr.mxu0 0.0
      %1997 = vmatpush1.msra.mxu0 %v1829
      %1998 = vmatprep.subr.mxu0 0.0
      %1999 = vmatpush1.msra.mxu0 0.0
      %2000 = vmatprep.subr.mxu0 0.0
      %2001 = vmatpush1.msra.mxu0 0.0
      %2002 = vmatprep.subr.mxu0 0.0
      %2003 = vmatpush1.msra.mxu0 0.0
      %2004 = vmatprep.subr.mxu0 0.0
      %2005 = vmatpush1.msra.mxu0 0.0
      %2006 = vmatprep.subr.mxu0 0.0
      %2007 = vmatpush1.msra.mxu0 0.0
      %2008 = vmatprep.subr.mxu0 0.0
      %2009 = vmatpush1.msra.mxu0 0.0
      %2010 = vmatprep.subr.mxu0 0.0
      %2011 = vmatpush1.msra.mxu0 0.0
      %2012 = vmatprep.subr.mxu0 0.0
      %2013 = vmatpush1.msra.mxu0 0.0
      %2014 = vmatprep.subr.mxu0 0.0
      %2015 = vmatpush1.msra.mxu0 0.0
      %2016 = vmatprep.subr.mxu0 0.0
      %2017 = vmatpush1.msra.mxu0 0.0
      %2018 = vmatprep.subr.mxu0 0.0
      %2019 = vmatpush1.msra.mxu0 0.0
      %2020 = vmatprep.subr.mxu0 0.0
      %2021 = vmatpush1.msra.mxu0 0.0
      %2022 = vmatprep.subr.mxu0 0.0
      %2023 = vmatpush1.msra.mxu0 0.0
      %2024 = vmatprep.subr.mxu0 0.0
      %2025 = vmatpush1.msra.mxu0 0.0
      %2026 = vmatprep.subr.mxu0 0.0
      %2027 = vmatpush1.msra.mxu0 0.0
      %2028 = vmatprep.subr.mxu0 0.0
      %2029 = vmatpush1.msra.mxu0 0.0
      %2030 = vmatprep.subr.mxu0 0.0
      %2031 = vmatpush1.msra.mxu0 0.0
      %2032 = vmatprep.subr.mxu0 0.0
      %2033 = vmatpush1.msra.mxu0 0.0
      %2034 = vmatprep.subr.mxu0 0.0
      %2035 = vmatpush1.msra.mxu0 0.0
      %2036 = vmatprep.subr.mxu0 0.0
      %2037 = vmatpush1.msra.mxu0 0.0
      %2038 = vmatprep.subr.mxu0 0.0
      %2039 = vmatpush1.msra.mxu0 0.0
      %2040 = vmatprep.subr.mxu0 0.0
      %2041 = vmatpush1.msra.mxu0 0.0
      %2042 = vmatprep.subr.mxu0 0.0
      %2043 = vmatpush1.msra.mxu0 0.0
      %2044 = vmatprep.subr.mxu0 0.0
      %2045 = vmatpush1.msra.mxu0 0.0
      %2046 = vmatprep.subr.mxu0 0.0
      %2047 = vmatpush1.msra.mxu0 0.0
      %2048 = vmatprep.subr.mxu0 0.0
      %2049 = vmatpush1.msra.mxu0 0.0
      %2050 = vmatprep.subr.mxu0 0.0
      %2051 = vmatpush1.msra.mxu0 0.0
      %2052 = vmatprep.subr.mxu0 0.0
      %2053 = vmatpush1.msra.mxu0 0.0
      %2054 = vmatprep.mubr.f32.mxu0 0.0
      %2055 = vmatmul.mubr.f32.gmra.mrb[0].mxu0 %v1943
      %v2056 = vpop.f32.mrb[0].mxu0
      %v2057 = vadd.f32 %v1865, %v2056
      %v2058 = vpop.f32.mrb[0].mxu0
      %2059 = vmatprep.mubr.f32.mxu0 0.0
      %2060 = vmatmul.mubr.f32.gmra.mrb[0].mxu0 %v1946
      %v2061 = vpop.f32.mrb[0].mxu0
      %v2062 = vadd.f32 %v1870, %v2061
      %v2063 = vpop.f32.mrb[0].mxu0
      %2064 = vmatprep.mubr.f32.mxu0 0.0
      %2065 = vmatmul.mubr.f32.gmra.mrb[0].mxu0 %v1949
      %v2066 = vpop.f32.mrb[0].mxu0
      %v2067 = vadd.f32 %v1875, %v2066
      %v2068 = vpop.f32.mrb[0].mxu0
      %2069 = vmatprep.mubr.f32.mxu0 0.0
      %2070 = vmatmul.mubr.f32.gmra.mrb[0].mxu0 %v1952
      %v2071 = vpop.f32.mrb[0].mxu0
      %v2072 = vadd.f32 %v1880, %v2071
      %v2073 = vpop.f32.mrb[0].mxu0
      %2074 = vmatprep.mubr.f32.mxu0 0.0
      %2075 = vmatmul.mubr.f32.gmra.mrb[0].mxu0 %v1955
      %v2076 = vpop.f32.mrb[0].mxu0
      %v2077 = vadd.f32 %v1885, %v2076
      %v2078 = vpop.f32.mrb[0].mxu0
      %2079 = vmatprep.mubr.f32.mxu0 0.0
      %2080 = vmatmul.mubr.f32.gmra.mrb[0].mxu0 %v1958
      %v2081 = vpop.f32.mrb[0].mxu0
      %v2082 = vadd.f32 %v1890, %v2081
      %v2083 = vpop.f32.mrb[0].mxu0
      %2084 = vmatprep.mubr.f32.mxu0 0.0
      %2085 = vmatmul.mubr.f32.gmra.mrb[0].mxu0 %v1961
      %v2086 = vpop.f32.mrb[0].mxu0
      %v2087 = vadd.f32 %v1895, %v2086
      %v2088 = vpop.f32.mrb[0].mxu0
      %2089 = vmatprep.mubr.f32.mxu0 0.0
      %2090 = vmatmul.mubr.f32.gmra.mrb[0].mxu0 %v1964
      %v2091 = vpop.f32.mrb[0].mxu0
      %v2092 = vadd.f32 %v1900, %v2091
      %v2093 = vpop.f32.mrb[0].mxu0
      %2094 = vmatprep.mubr.f32.mxu0 0.0
      %2095 = vmatmul.mubr.f32.gmra.mrb[0].mxu0 %v1967
      %v2096 = vpop.f32.mrb[0].mxu0
      %v2097 = vadd.f32 %v1905, %v2096
      %v2098 = vpop.f32.mrb[0].mxu0
      %2099 = vmatprep.mubr.f32.mxu0 0.0
      %2100 = vmatmul.mubr.f32.gmra.mrb[0].mxu0 %v1970
      %v2101 = vpop.f32.mrb[0].mxu0
      %v2102 = vadd.f32 %v1910, %v2101
      %v2103 = vpop.f32.mrb[0].mxu0
      %2104 = vmatprep.mubr.f32.mxu0 0.0
      %2105 = vmatmul.mubr.f32.gmra.mrb[0].mxu0 %v1973
      %v2106 = vpop.f32.mrb[0].mxu0
      %v2107 = vadd.f32 %v1915, %v2106
      %v2108 = vpop.f32.mrb[0].mxu0
      %2109 = vmatprep.mubr.f32.mxu0 0.0
      %2110 = vmatmul.mubr.f32.gmra.mrb[0].mxu0 %v1976
      %v2111 = vpop.f32.mrb[0].mxu0
      %v2112 = vadd.f32 %v1920, %v2111
      %v2113 = vpop.f32.mrb[0].mxu0
      %2114 = vmatprep.mubr.f32.mxu0 0.0
      %2115 = vmatmul.mubr.f32.gmra.mrb[0].mxu0 %v1979
      %v2116 = vpop.f32.mrb[0].mxu0
      %v2117 = vadd.f32 %v1925, %v2116
      %v2118 = vpop.f32.mrb[0].mxu0
      %2119 = vmatprep.mubr.f32.mxu0 0.0
      %2120 = vmatmul.mubr.f32.gmra.mrb[0].mxu0 %v1982
      %v2121 = vpop.f32.mrb[0].mxu0
      %v2122 = vadd.f32 %v1930, %v2121
      %v2123 = vpop.f32.mrb[0].mxu0
      %2124 = vmatprep.mubr.f32.mxu0 0.0
      %2125 = vmatmul.mubr.f32.gmra.mrb[0].mxu0 %v1985
      %v2126 = vpop.f32.mrb[0].mxu0
      %v2127 = vadd.f32 %v1935, %v2126
      %v2128 = vpop.f32.mrb[0].mxu0
      %2129 = vmatprep.mubr.f32.mxu0 0.0
      %2130 = vmatmul.mubr.f32.gmra.mrb[0].mxu0 %v1988
      %v2131 = vpop.f32.mrb[0].mxu0
      %v2132 = vadd.f32 %v1940, %v2131
      %v2133 = vpop.f32.mrb[0].mxu0
      %2134 = vdwg.mxu0
      %v2135 = vmul.f32 %v2057, 0.70710677
      %v2136 = vmul.f32 %v2062, 0.70710677
      %v2137 = vmul.f32 %v2067, 0.70710677
      %v2138 = vmul.f32 %v2072, 0.70710677
      %v2139 = vmul.f32 %v2077, 0.70710677
      %v2140 = vmul.f32 %v2082, 0.70710677
      %v2141 = vmul.f32 %v2087, 0.70710677
      %v2142 = vmul.f32 %v2092, 0.70710677
      %v2143 = vmul.f32 %v2097, 0.70710677
      %v2144 = vmul.f32 %v2102, 0.70710677
      %v2145 = vmul.f32 %v2107, 0.70710677
      %v2146 = vmul.f32 %v2112, 0.70710677
      %v2147 = vmul.f32 %v2117, 0.70710677
      %v2148 = vmul.f32 %v2122, 0.70710677
      %v2149 = vmul.f32 %v2127, 0.70710677
      %v2150 = vmul.f32 %v2132, 0.70710677
      %v2151 = vand.u32 2147483647, %v2135
      %v2152 = vand.u32 2147483647, %v2136
      %v2153 = vand.u32 2147483647, %v2137
      %v2154 = vand.u32 2147483647, %v2138
      %v2155 = vand.u32 2147483647, %v2139
      %v2156 = vand.u32 2147483647, %v2140
      %v2157 = vand.u32 2147483647, %v2141
      %v2158 = vand.u32 2147483647, %v2142
      %v2159 = vand.u32 2147483647, %v2143
      %v2160 = vand.u32 2147483647, %v2144
      %v2161 = vand.u32 2147483647, %v2145
      %v2162 = vand.u32 2147483647, %v2146
      %v2163 = vand.u32 2147483647, %v2147
      %v2164 = vand.u32 2147483647, %v2148
      %v2165 = vand.u32 2147483647, %v2149
      %v2166 = vand.u32 2147483647, %v2150
      %v2167 = vmul.f32 %v2151, 0.3275911
      %v2168 = vmul.f32 %v2152, 0.3275911
      %v2169 = vmul.f32 %v2153, 0.3275911
      %v2170 = vmul.f32 %v2154, 0.3275911
      %v2171 = vmul.f32 %v2155, 0.3275911
      %v2172 = vmul.f32 %v2156, 0.3275911
      %v2173 = vmul.f32 %v2157, 0.3275911
      %v2174 = vmul.f32 %v2158, 0.3275911
      %v2175 = vmul.f32 %v2159, 0.3275911
      %v2176 = vmul.f32 %v2160, 0.3275911
      %v2177 = vmul.f32 %v2161, 0.3275911
      %v2178 = vmul.f32 %v2162, 0.3275911
      %v2179 = vmul.f32 %v2163, 0.3275911
      %v2180 = vmul.f32 %v2164, 0.3275911
      %v2181 = vmul.f32 %v2165, 0.3275911
      %v2182 = vmul.f32 %v2166, 0.3275911
      %v2183 = vadd.f32 %v2167, 1.0
      %v2184 = vadd.f32 %v2168, 1.0
      %v2185 = vadd.f32 %v2169, 1.0
      %v2186 = vadd.f32 %v2170, 1.0
      %v2187 = vadd.f32 %v2171, 1.0
      %v2188 = vadd.f32 %v2172, 1.0
      %v2189 = vadd.f32 %v2173, 1.0
      %v2190 = vadd.f32 %v2174, 1.0
      %v2191 = vadd.f32 %v2175, 1.0
      %v2192 = vadd.f32 %v2176, 1.0
      %v2193 = vadd.f32 %v2177, 1.0
      %v2194 = vadd.f32 %v2178, 1.0
      %v2195 = vadd.f32 %v2179, 1.0
      %v2196 = vadd.f32 %v2180, 1.0
      %v2197 = vadd.f32 %v2181, 1.0
      %v2198 = vadd.f32 %v2182, 1.0
      %v2199 = vrcp.pop %v2183
      %v2200 = vrcp.pop %v2184
      %v2201 = vrcp.pop %v2185
      %v2202 = vrcp.pop %v2186
      %v2203 = vrcp.pop %v2187
      %v2204 = vrcp.pop %v2188
      %v2205 = vrcp.pop %v2189
      %v2206 = vrcp.pop %v2190
      %v2207 = vrcp.pop %v2191
      %v2208 = vrcp.pop %v2192
      %v2209 = vrcp.pop %v2193
      %v2210 = vrcp.pop %v2194
      %v2211 = vrcp.pop %v2195
      %v2212 = vrcp.pop %v2196
      %v2213 = vrcp.pop %v2197
      %v2214 = vrcp.pop %v2198
      %v2215 = vmul.f32 %v2199, 1.0614054
      %v2216 = vmul.f32 %v2200, 1.0614054
      %v2217 = vmul.f32 %v2201, 1.0614054
      %v2218 = vmul.f32 %v2202, 1.0614054
      %v2219 = vmul.f32 %v2203, 1.0614054
      %v2220 = vmul.f32 %v2204, 1.0614054
      %v2221 = vmul.f32 %v2205, 1.0614054
      %v2222 = vmul.f32 %v2206, 1.0614054
      %v2223 = vmul.f32 %v2207, 1.0614054
      %v2224 = vmul.f32 %v2208, 1.0614054
      %v2225 = vmul.f32 %v2209, 1.0614054
      %v2226 = vmul.f32 %v2210, 1.0614054
      %v2227 = vmul.f32 %v2211, 1.0614054
      %v2228 = vmul.f32 %v2212, 1.0614054
      %v2229 = vmul.f32 %v2213, 1.0614054
      %v2230 = vmul.f32 %v2214, 1.0614054
      %v2231 = vadd.f32 %v2215, -1.4531521
      %v2232 = vadd.f32 %v2216, -1.4531521
      %v2233 = vadd.f32 %v2217, -1.4531521
      %v2234 = vadd.f32 %v2218, -1.4531521
      %v2235 = vadd.f32 %v2219, -1.4531521
      %v2236 = vadd.f32 %v2220, -1.4531521
      %v2237 = vadd.f32 %v2221, -1.4531521
      %v2238 = vadd.f32 %v2222, -1.4531521
      %v2239 = vadd.f32 %v2223, -1.4531521
      %v2240 = vadd.f32 %v2224, -1.4531521
      %v2241 = vadd.f32 %v2225, -1.4531521
      %v2242 = vadd.f32 %v2226, -1.4531521
      %v2243 = vadd.f32 %v2227, -1.4531521
      %v2244 = vadd.f32 %v2228, -1.4531521
      %v2245 = vadd.f32 %v2229, -1.4531521
      %v2246 = vadd.f32 %v2230, -1.4531521
      %v2247 = vmul.f32 %v2231, %v2199
      %v2248 = vmul.f32 %v2232, %v2200
      %v2249 = vmul.f32 %v2233, %v2201
      %v2250 = vmul.f32 %v2234, %v2202
      %v2251 = vmul.f32 %v2235, %v2203
      %v2252 = vmul.f32 %v2236, %v2204
      %v2253 = vmul.f32 %v2237, %v2205
      %v2254 = vmul.f32 %v2238, %v2206
      %v2255 = vmul.f32 %v2239, %v2207
      %v2256 = vmul.f32 %v2240, %v2208
      %v2257 = vmul.f32 %v2241, %v2209
      %v2258 = vmul.f32 %v2242, %v2210
      %v2259 = vmul.f32 %v2243, %v2211
      %v2260 = vmul.f32 %v2244, %v2212
      %v2261 = vmul.f32 %v2245, %v2213
      %v2262 = vmul.f32 %v2246, %v2214
      %v2263 = vadd.f32 %v2247, 1.4214138
      %v2264 = vadd.f32 %v2248, 1.4214138
      %v2265 = vadd.f32 %v2249, 1.4214138
      %v2266 = vadd.f32 %v2250, 1.4214138
      %v2267 = vadd.f32 %v2251, 1.4214138
      %v2268 = vadd.f32 %v2252, 1.4214138
      %v2269 = vadd.f32 %v2253, 1.4214138
      %v2270 = vadd.f32 %v2254, 1.4214138
      %v2271 = vadd.f32 %v2255, 1.4214138
      %v2272 = vadd.f32 %v2256, 1.4214138
      %v2273 = vadd.f32 %v2257, 1.4214138
      %v2274 = vadd.f32 %v2258, 1.4214138
      %v2275 = vadd.f32 %v2259, 1.4214138
      %v2276 = vadd.f32 %v2260, 1.4214138
      %v2277 = vadd.f32 %v2261, 1.4214138
      %v2278 = vadd.f32 %v2262, 1.4214138
      %v2279 = vmul.f32 %v2263, %v2199
      %v2280 = vmul.f32 %v2264, %v2200
      %v2281 = vmul.f32 %v2265, %v2201
      %v2282 = vmul.f32 %v2266, %v2202
      %v2283 = vmul.f32 %v2267, %v2203
      %v2284 = vmul.f32 %v2268, %v2204
      %v2285 = vmul.f32 %v2269, %v2205
      %v2286 = vmul.f32 %v2270, %v2206
      %v2287 = vmul.f32 %v2271, %v2207
      %v2288 = vmul.f32 %v2272, %v2208
      %v2289 = vmul.f32 %v2273, %v2209
      %v2290 = vmul.f32 %v2274, %v2210
      %v2291 = vmul.f32 %v2275, %v2211
      %v2292 = vmul.f32 %v2276, %v2212
      %v2293 = vmul.f32 %v2277, %v2213
      %v2294 = vmul.f32 %v2278, %v2214
      %v2295 = vadd.f32 %v2279, -0.28449672
      %v2296 = vadd.f32 %v2280, -0.28449672
      %v2297 = vadd.f32 %v2281, -0.28449672
      %v2298 = vadd.f32 %v2282, -0.28449672
      %v2299 = vadd.f32 %v2283, -0.28449672
      %v2300 = vadd.f32 %v2284, -0.28449672
      %v2301 = vadd.f32 %v2285, -0.28449672
      %v2302 = vadd.f32 %v2286, -0.28449672
      %v2303 = vadd.f32 %v2287, -0.28449672
      %v2304 = vadd.f32 %v2288, -0.28449672
      %v2305 = vadd.f32 %v2289, -0.28449672
      %v2306 = vadd.f32 %v2290, -0.28449672
      %v2307 = vadd.f32 %v2291, -0.28449672
      %v2308 = vadd.f32 %v2292, -0.28449672
      %v2309 = vadd.f32 %v2293, -0.28449672
      %v2310 = vadd.f32 %v2294, -0.28449672
      %v2311 = vmul.f32 %v2295, %v2199
      %v2312 = vmul.f32 %v2296, %v2200
      %v2313 = vmul.f32 %v2297, %v2201
      %v2314 = vmul.f32 %v2298, %v2202
      %v2315 = vmul.f32 %v2299, %v2203
      %v2316 = vmul.f32 %v2300, %v2204
      %v2317 = vmul.f32 %v2301, %v2205
      %v2318 = vmul.f32 %v2302, %v2206
      %v2319 = vmul.f32 %v2303, %v2207
      %v2320 = vmul.f32 %v2304, %v2208
      %v2321 = vmul.f32 %v2305, %v2209
      %v2322 = vmul.f32 %v2306, %v2210
      %v2323 = vmul.f32 %v2307, %v2211
      %v2324 = vmul.f32 %v2308, %v2212
      %v2325 = vmul.f32 %v2309, %v2213
      %v2326 = vmul.f32 %v2310, %v2214
      %v2327 = vadd.f32 %v2311, 0.2548296
      %v2328 = vadd.f32 %v2312, 0.2548296
      %v2329 = vadd.f32 %v2313, 0.2548296
      %v2330 = vadd.f32 %v2314, 0.2548296
      %v2331 = vadd.f32 %v2315, 0.2548296
      %v2332 = vadd.f32 %v2316, 0.2548296
      %v2333 = vadd.f32 %v2317, 0.2548296
      %v2334 = vadd.f32 %v2318, 0.2548296
      %v2335 = vadd.f32 %v2319, 0.2548296
      %v2336 = vadd.f32 %v2320, 0.2548296
      %v2337 = vadd.f32 %v2321, 0.2548296
      %v2338 = vadd.f32 %v2322, 0.2548296
      %v2339 = vadd.f32 %v2323, 0.2548296
      %v2340 = vadd.f32 %v2324, 0.2548296
      %v2341 = vadd.f32 %v2325, 0.2548296
      %v2342 = vadd.f32 %v2326, 0.2548296
      %v2343 = vmul.f32 %v2327, %v2199
      %v2344 = vmul.f32 %v2328, %v2200
      %v2345 = vmul.f32 %v2329, %v2201
      %v2346 = vmul.f32 %v2330, %v2202
      %v2347 = vmul.f32 %v2331, %v2203
      %v2348 = vmul.f32 %v2332, %v2204
      %v2349 = vmul.f32 %v2333, %v2205
      %v2350 = vmul.f32 %v2334, %v2206
      %v2351 = vmul.f32 %v2335, %v2207
      %v2352 = vmul.f32 %v2336, %v2208
      %v2353 = vmul.f32 %v2337, %v2209
      %v2354 = vmul.f32 %v2338, %v2210
      %v2355 = vmul.f32 %v2339, %v2211
      %v2356 = vmul.f32 %v2340, %v2212
      %v2357 = vmul.f32 %v2341, %v2213
      %v2358 = vmul.f32 %v2342, %v2214
      %v2359 = vsub.f32 0.0, %v2151
      %v2360 = vsub.f32 0.0, %v2152
      %v2361 = vsub.f32 0.0, %v2153
      %v2362 = vsub.f32 0.0, %v2154
      %v2363 = vsub.f32 0.0, %v2155
      %v2364 = vsub.f32 0.0, %v2156
      %v2365 = vsub.f32 0.0, %v2157
      %v2366 = vsub.f32 0.0, %v2158
      %v2367 = vsub.f32 0.0, %v2159
      %v2368 = vsub.f32 0.0, %v2160
      %v2369 = vsub.f32 0.0, %v2161
      %v2370 = vsub.f32 0.0, %v2162
      %v2371 = vsub.f32 0.0, %v2163
      %v2372 = vsub.f32 0.0, %v2164
      %v2373 = vsub.f32 0.0, %v2165
      %v2374 = vsub.f32 0.0, %v2166
      %v2375 = vmul.f32 %v2359, %v2151
      %v2376 = vmul.f32 %v2360, %v2152
      %v2377 = vmul.f32 %v2361, %v2153
      %v2378 = vmul.f32 %v2362, %v2154
      %v2379 = vmul.f32 %v2363, %v2155
      %v2380 = vmul.f32 %v2364, %v2156
      %v2381 = vmul.f32 %v2365, %v2157
      %v2382 = vmul.f32 %v2366, %v2158
      %v2383 = vmul.f32 %v2367, %v2159
      %v2384 = vmul.f32 %v2368, %v2160
      %v2385 = vmul.f32 %v2369, %v2161
      %v2386 = vmul.f32 %v2370, %v2162
      %v2387 = vmul.f32 %v2371, %v2163
      %v2388 = vmul.f32 %v2372, %v2164
      %v2389 = vmul.f32 %v2373, %v2165
      %v2390 = vmul.f32 %v2374, %v2166
      %v2391 = vmul.f32 %v2375, 1.442695
      %v2392 = vpow.pop %v2391
      %v2393 = vmul.f32 %v2376, 1.442695
      %v2394 = vpow.pop %v2393
      %v2395 = vmul.f32 %v2377, 1.442695
      %v2396 = vpow.pop %v2395
      %v2397 = vmul.f32 %v2378, 1.442695
      %v2398 = vpow.pop %v2397
      %v2399 = vmul.f32 %v2379, 1.442695
      %v2400 = vpow.pop %v2399
      %v2401 = vmul.f32 %v2380, 1.442695
      %v2402 = vpow.pop %v2401
      %v2403 = vmul.f32 %v2381, 1.442695
      %v2404 = vpow.pop %v2403
      %v2405 = vmul.f32 %v2382, 1.442695
      %v2406 = vpow.pop %v2405
      %v2407 = vmul.f32 %v2383, 1.442695
      %v2408 = vpow.pop %v2407
      %v2409 = vmul.f32 %v2384, 1.442695
      %v2410 = vpow.pop %v2409
      %v2411 = vmul.f32 %v2385, 1.442695
      %v2412 = vpow.pop %v2411
      %v2413 = vmul.f32 %v2386, 1.442695
      %v2414 = vpow.pop %v2413
      %v2415 = vmul.f32 %v2387, 1.442695
      %v2416 = vpow.pop %v2415
      %v2417 = vmul.f32 %v2388, 1.442695
      %v2418 = vpow.pop %v2417
      %v2419 = vmul.f32 %v2389, 1.442695
      %v2420 = vpow.pop %v2419
      %v2421 = vmul.f32 %v2390, 1.442695
      %v2422 = vpow.pop %v2421
      %v2423 = vmul.f32 %v2343, %v2392
      %v2424 = vmul.f32 %v2344, %v2394
      %v2425 = vmul.f32 %v2345, %v2396
      %v2426 = vmul.f32 %v2346, %v2398
      %v2427 = vmul.f32 %v2347, %v2400
      %v2428 = vmul.f32 %v2348, %v2402
      %v2429 = vmul.f32 %v2349, %v2404
      %v2430 = vmul.f32 %v2350, %v2406
      %v2431 = vmul.f32 %v2351, %v2408
      %v2432 = vmul.f32 %v2352, %v2410
      %v2433 = vmul.f32 %v2353, %v2412
      %v2434 = vmul.f32 %v2354, %v2414
      %v2435 = vmul.f32 %v2355, %v2416
      %v2436 = vmul.f32 %v2356, %v2418
      %v2437 = vmul.f32 %v2357, %v2420
      %v2438 = vmul.f32 %v2358, %v2422
      %v2439 = vsub.f32 1.0, %v2423
      %v2440 = vsub.f32 1.0, %v2424
      %v2441 = vsub.f32 1.0, %v2425
      %v2442 = vsub.f32 1.0, %v2426
      %v2443 = vsub.f32 1.0, %v2427
      %v2444 = vsub.f32 1.0, %v2428
      %v2445 = vsub.f32 1.0, %v2429
      %v2446 = vsub.f32 1.0, %v2430
      %v2447 = vsub.f32 1.0, %v2431
      %v2448 = vsub.f32 1.0, %v2432
      %v2449 = vsub.f32 1.0, %v2433
      %v2450 = vsub.f32 1.0, %v2434
      %v2451 = vsub.f32 1.0, %v2435
      %v2452 = vsub.f32 1.0, %v2436
      %v2453 = vsub.f32 1.0, %v2437
      %v2454 = vsub.f32 1.0, %v2438
      %vm2455 = vcmp.ge.f32.partialorder %v2135, 0.0
      %vm2456 = vcmp.ge.f32.partialorder %v2136, 0.0
      %vm2457 = vcmp.ge.f32.partialorder %v2137, 0.0
      %vm2458 = vcmp.ge.f32.partialorder %v2138, 0.0
      %vm2459 = vcmp.ge.f32.partialorder %v2139, 0.0
      %vm2460 = vcmp.ge.f32.partialorder %v2140, 0.0
      %vm2461 = vcmp.ge.f32.partialorder %v2141, 0.0
      %vm2462 = vcmp.ge.f32.partialorder %v2142, 0.0
      %vm2463 = vcmp.ge.f32.partialorder %v2143, 0.0
      %vm2464 = vcmp.ge.f32.partialorder %v2144, 0.0
      %vm2465 = vcmp.ge.f32.partialorder %v2145, 0.0
      %vm2466 = vcmp.ge.f32.partialorder %v2146, 0.0
      %vm2467 = vcmp.ge.f32.partialorder %v2147, 0.0
      %vm2468 = vcmp.ge.f32.partialorder %v2148, 0.0
      %vm2469 = vcmp.ge.f32.partialorder %v2149, 0.0
      %vm2470 = vcmp.ge.f32.partialorder %v2150, 0.0
      %v2471 = vsub.f32 0.0, %v2439
      %v2472 = vsub.f32 0.0, %v2440
      %v2473 = vsub.f32 0.0, %v2441
      %v2474 = vsub.f32 0.0, %v2442
      %v2475 = vsub.f32 0.0, %v2443
      %v2476 = vsub.f32 0.0, %v2444
      %v2477 = vsub.f32 0.0, %v2445
      %v2478 = vsub.f32 0.0, %v2446
      %v2479 = vsub.f32 0.0, %v2447
      %v2480 = vsub.f32 0.0, %v2448
      %v2481 = vsub.f32 0.0, %v2449
      %v2482 = vsub.f32 0.0, %v2450
      %v2483 = vsub.f32 0.0, %v2451
      %v2484 = vsub.f32 0.0, %v2452
      %v2485 = vsub.f32 0.0, %v2453
      %v2486 = vsub.f32 0.0, %v2454
      %v2487 = vsel %vm2455, %v2439, %v2471
      %v2488 = vsel %vm2456, %v2440, %v2472
      %v2489 = vsel %vm2457, %v2441, %v2473
      %v2490 = vsel %vm2458, %v2442, %v2474
      %v2491 = vsel %vm2459, %v2443, %v2475
      %v2492 = vsel %vm2460, %v2444, %v2476
      %v2493 = vsel %vm2461, %v2445, %v2477
      %v2494 = vsel %vm2462, %v2446, %v2478
      %v2495 = vsel %vm2463, %v2447, %v2479
      %v2496 = vsel %vm2464, %v2448, %v2480
      %v2497 = vsel %vm2465, %v2449, %v2481
      %v2498 = vsel %vm2466, %v2450, %v2482
      %v2499 = vsel %vm2467, %v2451, %v2483
      %v2500 = vsel %vm2468, %v2452, %v2484
      %v2501 = vsel %vm2469, %v2453, %v2485
      %v2502 = vsel %vm2470, %v2454, %v2486
      %v2503 = vmul.f32 %v2057, 0.5
      %v2504 = vmul.f32 %v2062, 0.5
      %v2505 = vmul.f32 %v2067, 0.5
      %v2506 = vmul.f32 %v2072, 0.5
      %v2507 = vmul.f32 %v2077, 0.5
      %v2508 = vmul.f32 %v2082, 0.5
      %v2509 = vmul.f32 %v2087, 0.5
      %v2510 = vmul.f32 %v2092, 0.5
      %v2511 = vmul.f32 %v2097, 0.5
      %v2512 = vmul.f32 %v2102, 0.5
      %v2513 = vmul.f32 %v2107, 0.5
      %v2514 = vmul.f32 %v2112, 0.5
      %v2515 = vmul.f32 %v2117, 0.5
      %v2516 = vmul.f32 %v2122, 0.5
      %v2517 = vmul.f32 %v2127, 0.5
      %v2518 = vmul.f32 %v2132, 0.5
      %v2519 = vadd.f32 %v2487, 1.0
      %v2520 = vadd.f32 %v2488, 1.0
      %v2521 = vadd.f32 %v2489, 1.0
      %v2522 = vadd.f32 %v2490, 1.0
      %v2523 = vadd.f32 %v2491, 1.0
      %v2524 = vadd.f32 %v2492, 1.0
      %v2525 = vadd.f32 %v2493, 1.0
      %v2526 = vadd.f32 %v2494, 1.0
      %v2527 = vadd.f32 %v2495, 1.0
      %v2528 = vadd.f32 %v2496, 1.0
      %v2529 = vadd.f32 %v2497, 1.0
      %v2530 = vadd.f32 %v2498, 1.0
      %v2531 = vadd.f32 %v2499, 1.0
      %v2532 = vadd.f32 %v2500, 1.0
      %v2533 = vadd.f32 %v2501, 1.0
      %v2534 = vadd.f32 %v2502, 1.0
      %v2535 = vmul.f32 %v2503, %v2519
      %v2536 = vmul.f32 %v2504, %v2520
      %v2537 = vmul.f32 %v2505, %v2521
      %v2538 = vmul.f32 %v2506, %v2522
      %v2539 = vmul.f32 %v2507, %v2523
      %v2540 = vmul.f32 %v2508, %v2524
      %v2541 = vmul.f32 %v2509, %v2525
      %v2542 = vmul.f32 %v2510, %v2526
      %v2543 = vmul.f32 %v2511, %v2527
      %v2544 = vmul.f32 %v2512, %v2528
      %v2545 = vmul.f32 %v2513, %v2529
      %v2546 = vmul.f32 %v2514, %v2530
      %v2547 = vmul.f32 %v2515, %v2531
      %v2548 = vmul.f32 %v2516, %v2532
      %v2549 = vmul.f32 %v2517, %v2533
      %v2550 = vmul.f32 %v2518, %v2534
      %v2551 = vld [vmem:[%s447] sm:$0xff]
      %v2552 = vld [vmem:[%s447 + $0x8] sm:$0xff]
      %v2553 = vld [vmem:[%s447 + $0x10] sm:$0xff]
      %v2554 = vld [vmem:[%s447 + $0x18] sm:$0xff]
      %2555 = vset.pattern.permute.xlu0 3
      %2556 = vperm.xlu0 %2555, %v1618
      %v2557 = vpop.permute.xlu0 %2556
      %2559 = vset.pattern.permute.xlu0 3
      %2560 = vperm.xlu0 %2559, %v1619
      %v2561 = vpop.permute.xlu0 %2560
      %2563 = vset.pattern.permute.xlu0 3
      %2564 = vperm.xlu0 %2563, %v1620
      %v2565 = vpop.permute.xlu0 %2564
      %2567 = vset.pattern.permute.xlu0 3
      %2568 = vperm.xlu0 %2567, %v1621
      %v2569 = vpop.permute.xlu0 %2568
      %2571 = vmatprep.subr.mxu0 0.0
      %2572 = vmatpush1.msra.mxu0 %v2535
      %2573 = vmatprep.subr.mxu0 0.0
      %2574 = vmatpush1.msra.mxu0 %v2536
      %2575 = vmatprep.subr.mxu0 0.0
      %2576 = vmatpush1.msra.mxu0 %v2537
      %2577 = vmatprep.subr.mxu0 0.0
      %2578 = vmatpush1.msra.mxu0 %v2538
      %2579 = vmatprep.subr.mxu0 0.0
      %2580 = vmatpush1.msra.mxu0 %v2539
      %2581 = vmatprep.subr.mxu0 0.0
      %2582 = vmatpush1.msra.mxu0 %v2540
      %2583 = vmatprep.subr.mxu0 0.0
      %2584 = vmatpush1.msra.mxu0 %v2541
      %2585 = vmatprep.subr.mxu0 0.0
      %2586 = vmatpush1.msra.mxu0 %v2542
      %2587 = vmatprep.subr.mxu0 0.0
      %2588 = vmatpush1.msra.mxu0 %v2543
      %2589 = vmatprep.subr.mxu0 0.0
      %2590 = vmatpush1.msra.mxu0 %v2544
      %2591 = vmatprep.subr.mxu0 0.0
      %2592 = vmatpush1.msra.mxu0 %v2545
      %2593 = vmatprep.subr.mxu0 0.0
      %2594 = vmatpush1.msra.mxu0 %v2546
      %2595 = vmatprep.subr.mxu0 0.0
      %2596 = vmatpush1.msra.mxu0 %v2547
      %2597 = vmatprep.subr.mxu0 0.0
      %2598 = vmatpush1.msra.mxu0 %v2548
      %2599 = vmatprep.subr.mxu0 0.0
      %2600 = vmatpush1.msra.mxu0 %v2549
      %2601 = vmatprep.subr.mxu0 0.0
      %2602 = vmatpush1.msra.mxu0 %v2550
      %2603 = vmatprep.subr.mxu0 0.0
      %2604 = vmatpush1.msra.mxu0 0.0
      %2605 = vmatprep.subr.mxu0 0.0
      %2606 = vmatpush1.msra.mxu0 0.0
      %2607 = vmatprep.subr.mxu0 0.0
      %2608 = vmatpush1.msra.mxu0 0.0
      %2609 = vmatprep.subr.mxu0 0.0
      %2610 = vmatpush1.msra.mxu0 0.0
      %2611 = vmatprep.subr.mxu0 0.0
      %2612 = vmatpush1.msra.mxu0 0.0
      %2613 = vmatprep.subr.mxu0 0.0
      %2614 = vmatpush1.msra.mxu0 0.0
      %2615 = vmatprep.subr.mxu0 0.0
      %2616 = vmatpush1.msra.mxu0 0.0
      %2617 = vmatprep.subr.mxu0 0.0
      %2618 = vmatpush1.msra.mxu0 0.0
      %2619 = vmatprep.subr.mxu0 0.0
      %2620 = vmatpush1.msra.mxu0 0.0
      %2621 = vmatprep.subr.mxu0 0.0
      %2622 = vmatpush1.msra.mxu0 0.0
      %2623 = vmatprep.subr.mxu0 0.0
      %2624 = vmatpush1.msra.mxu0 0.0
      %2625 = vmatprep.subr.mxu0 0.0
      %2626 = vmatpush1.msra.mxu0 0.0
      %2627 = vmatprep.subr.mxu0 0.0
      %2628 = vmatpush1.msra.mxu0 0.0
      %2629 = vmatprep.subr.mxu0 0.0
      %2630 = vmatpush1.msra.mxu0 0.0
      %2631 = vmatprep.subr.mxu0 0.0
      %2632 = vmatpush1.msra.mxu0 0.0
      %2633 = vmatprep.subr.mxu0 0.0
      %2634 = vmatpush1.msra.mxu0 0.0
      %2635 = vmatprep.mubr.f32.mxu0 0.0
      %2636 = vmatmul.mubr.f32.gmra.mrb[0].mxu0 %v2551
      %v2637 = vpop.f32.mrb[0].mxu0
      %v2638 = vadd.f32 %v2557, %v2637
      %v2639 = vpop.f32.mrb[0].mxu0
      %2640 = vmatprep.mubr.f32.mxu0 0.0
      %2641 = vmatmul.mubr.f32.gmra.mrb[0].mxu0 %v2552
      %v2642 = vpop.f32.mrb[0].mxu0
      %v2643 = vadd.f32 %v2561, %v2642
      %v2644 = vpop.f32.mrb[0].mxu0
      %2645 = vmatprep.mubr.f32.mxu0 0.0
      %2646 = vmatmul.mubr.f32.gmra.mrb[0].mxu0 %v2553
      %v2647 = vpop.f32.mrb[0].mxu0
      %v2648 = vadd.f32 %v2565, %v2647
      %v2649 = vpop.f32.mrb[0].mxu0
      %2650 = vmatprep.mubr.f32.mxu0 0.0
      %2651 = vmatmul.mubr.f32.gmra.mrb[0].mxu0 %v2554
      %v2652 = vpop.f32.mrb[0].mxu0
      %v2653 = vadd.f32 %v2569, %v2652
      %v2654 = vpop.f32.mrb[0].mxu0
      %2655 = vdwg.mxu0
      %v2656 = vadd.f32 %v1826, %v2638
      %v2657 = vadd.f32 %v1827, %v2643
      %v2658 = vadd.f32 %v1828, %v2648
      %v2659 = vadd.f32 %v1829, %v2653
      %v2660 = vsel %vm849, %v2656, 0.0
      %v2661 = vsel %vm849, %v2657, 0.0
      %v2662 = vadd.f32 %v2660, %v2661
      %v2663 = vsel %vm849, %v2658, 0.0
      %v2664 = vadd.f32 %v2662, %v2663
      %v2665 = vsel %vm849, %v2659, 0.0
      %v2666 = vadd.f32 %v2664, %v2665
      %v2667 = vrot.slane %v2666, 4
      %v2668 = vadd.f32 %v2666, %v2667
      %v2669 = vrot.slane %v2668, 2
      %v2670 = vadd.f32 %v2668, %v2669
      %v2671 = vrot.slane %v2670, 1
      %v2672 = vadd.f32 %v2670, %v2671
      %v2673 = vmul.f32 %v2672, %v1760
      %v2674 = vsub.f32 %v2656, %v2673
      %v2675 = vsub.f32 %v2657, %v2673
      %v2676 = vsub.f32 %v2658, %v2673
      %v2677 = vsub.f32 %v2659, %v2673
      %v2678 = vmul.f32 %v2674, %v2674
      %v2679 = vmul.f32 %v2675, %v2675
      %v2680 = vmul.f32 %v2676, %v2676
      %v2681 = vmul.f32 %v2677, %v2677
      %v2682 = vsel %vm849, %v2678, 0.0
      %v2683 = vsel %vm849, %v2679, 0.0
      %v2684 = vadd.f32 %v2682, %v2683
      %v2685 = vsel %vm849, %v2680, 0.0
      %v2686 = vadd.f32 %v2684, %v2685
      %v2687 = vsel %vm849, %v2681, 0.0
      %v2688 = vadd.f32 %v2686, %v2687
      %v2689 = vrot.slane %v2688, 4
      %v2690 = vadd.f32 %v2688, %v2689
      %v2691 = vrot.slane %v2690, 2
      %v2692 = vadd.f32 %v2690, %v2691
      %v2693 = vrot.slane %v2692, 1
      %v2694 = vadd.f32 %v2692, %v2693
      %v2695 = vmul.f32 %v2694, %v1760
      %v2696 = vadd.f32 %v2695, 1e-05
      %v2697 = vrsqrt.pop %v2696
      %v2698 = vmul.f32 %v2674, %v2697
      %v2699 = vmul.f32 %v2675, %v2697
      %v2700 = vmul.f32 %v2676, %v2697
      %v2701 = vmul.f32 %v2677, %v2697
      %2702 = vset.pattern.permute.xlu0 4
      %2703 = vperm.xlu0 %2702, %v1618
      %v2704 = vpop.permute.xlu0 %2703
      %2706 = vset.pattern.permute.xlu0 4
      %2707 = vperm.xlu0 %2706, %v1619
      %v2708 = vpop.permute.xlu0 %2707
      %2710 = vset.pattern.permute.xlu0 4
      %2711 = vperm.xlu0 %2710, %v1620
      %v2712 = vpop.permute.xlu0 %2711
      %2714 = vset.pattern.permute.xlu0 4
      %2715 = vperm.xlu0 %2714, %v1621
      %v2716 = vpop.permute.xlu0 %2715
      %v2718 = vmul.f32 %v2698, %v2704
      %v2719 = vmul.f32 %v2699, %v2708
      %v2720 = vmul.f32 %v2700, %v2712
      %v2721 = vmul.f32 %v2701, %v2716
      %2722 = vset.pattern.permute.xlu0 5
      %2723 = vperm.xlu0 %2722, %v1618
      %v2724 = vpop.permute.xlu0 %2723
      %2726 = vset.pattern.permute.xlu0 5
      %2727 = vperm.xlu0 %2726, %v1619
      %v2728 = vpop.permute.xlu0 %2727
      %2730 = vset.pattern.permute.xlu0 5
      %2731 = vperm.xlu0 %2730, %v1620
      %v2732 = vpop.permute.xlu0 %2731
      %2734 = vset.pattern.permute.xlu0 5
      %2735 = vperm.xlu0 %2734, %v1621
      %v2736 = vpop.permute.xlu0 %2735
      %v2738 = vadd.f32 %v2718, %v2724
      %v2739 = vadd.f32 %v2719, %v2728
      %v2740 = vadd.f32 %v2720, %v2732
      %v2741 = vadd.f32 %v2721, %v2736
      %2742 = vst.msk [vmem:[#allocation2] sm:$0xff] %vm849, %v2738
      %2743 = vst.msk [vmem:[#allocation2 + $0x8] sm:$0xff] %vm849, %v2739
      %2744 = vst.msk [vmem:[#allocation2 + $0x10] sm:$0xff] %vm849, %v2740
      %2745 = vst.msk [vmem:[#allocation2 + $0x18] sm:$0xff] %vm849, %v2741
      %p2746 = scmp.eq.s32.totalorder %s24, 1
      // Predicated region
      $region57: #{tpu_custom_call.1} parent=51 // pred_check
        %p2747 = pneg %p2746
      $region58: #{tpu_custom_call.1} parent=51 // pred_check_branch
        %2749 = sbr.rel (%p2747) target = $region60
      $region59: #{tpu_custom_call.1} parent=51 // pred_region
        %2750 = vst.msk [vmem:[%s457] sm:$0xff] %vm849, %v2738
        %2751 = vst.msk [vmem:[%s457 + $0x8] sm:$0xff] %vm849, %v2739
        %2752 = vst.msk [vmem:[%s457 + $0x10] sm:$0xff] %vm849, %v2740
        %2753 = vst.msk [vmem:[%s457 + $0x18] sm:$0xff] %vm849, %v2741
      $region60: #{tpu_custom_call.1} parent=51 // pred_fallthru
        _
      %p2754 = scmp.lt.s32.totalorder %s23, 1
      %s2755 = scalar_select %p2754, %s23, 1
      %s2756 = smul.addr %s2755, 4
      %s2757 = smul.addr %s2756, 8
      %s2758 = scalar_lea.vmem %s8, %s2757
      // Predicated region
      $region61: #{tpu_custom_call.1} parent=51 // pred_check
        %p2759 = pneg %p257
      $region62: #{tpu_custom_call.1} parent=51 // pred_check_branch
        %2761 = sbr.rel (%p2759) target = $region64
      $region63: #{tpu_custom_call.1} parent=51 // pred_region
        _
      $region64: #{tpu_custom_call.1} parent=51 // pred_fallthru
        _
    $region52: #{tpu_custom_call.1} parent=5 // pred_fallthru
      _
    %p2762 = scmp.le.s32.totalorder 2, %s14
    // Predicated region
    $region65: #{tpu_custom_call.1} parent=5 // pred_check
      %p2763 = pneg %p2762
    $region66: #{tpu_custom_call.1} parent=5 // pred_check_branch
      %2765 = sbr.rel (%p2763) target = $region68
    $region67: #{tpu_custom_call.1} parent=5 // pred_region
      %s2766 = ssub.s32 %s14, 2
      // Predicated region
      $region69: #{tpu_custom_call.1} parent=67 // pred_check
        %p2767 = pneg %p263
      $region70: #{tpu_custom_call.1} parent=67 // pred_check_branch
        %2769 = sbr.rel (%p2767) target = $region72
      $region71: #{tpu_custom_call.1} parent=67 // pred_region
        %p2770 = scmp.lt.s32.totalorder %s25, 1
        %s2771 = scalar_select %p2770, %s25, 1
        %s2772 = smul.addr %s2771, 4
        %s2773 = smul.addr %s2772, 8
        %s2774 = scalar_lea.vmem %s8, %s2773
      $region72: #{tpu_custom_call.1} parent=67 // pred_fallthru
        _
    $region68: #{tpu_custom_call.1} parent=5 // pred_fallthru
      _
  $region6: #{tpu_custom_call.1} parent=0 // loop_footer
    %s18 = sadd.s32 1, %s14
  $region7: #{tpu_custom_call.1} parent=0 // loop_footer_branch
    %13 = sbr.rel target = $region3
  $region8: #{tpu_custom_call.1} parent=0 // loop_exit
    _

</llo_original>
